<compile_context>
chip_gen: v6e
topology: v6e:2x2x1
jax: 0.10.0
libtpu: 0.0.40
codegen_flags: <defaults>
</compile_context>

<pallas_src>
import functools

import jax
import jax.numpy as jnp
from jax.experimental import pallas as pl
from jax.experimental.pallas import tpu as pltpu


def _convlstm_kernel(w_ref, act_ref, c_ref, h_out_ref, c_out_ref, cc_ref, *,
                     hid):
    # w_ref:   (4*hid, Kpad)   weights, bias folded in as an extra column
    # act_ref: (Kpad, Nblk)    im2col activations (ones-row at the bias column)
    # c_ref:   (hid, Nblk)     current cell state (lane-dense)
    # cc_ref:  (4*hid, Nblk)   VMEM scratch for the gate pre-activations
    cc_ref[...] = jnp.dot(w_ref[...], act_ref[...],
                          preferred_element_type=jnp.float32)

    # Gate rows are [i | f | o | g]; sigmoid gates are a contiguous 3*hid
    # sublane block, tanh gate the last hid rows.  All tiles are 128-lane wide.
    i = jax.nn.sigmoid(cc_ref[0 * hid:1 * hid, :])
    f = jax.nn.sigmoid(cc_ref[1 * hid:2 * hid, :])
    o = jax.nn.sigmoid(cc_ref[2 * hid:3 * hid, :])
    g = jnp.tanh(cc_ref[3 * hid:4 * hid, :])

    c_next = f * c_ref[...] + i * g
    c_out_ref[...] = c_next
    h_out_ref[...] = o * jnp.tanh(c_next)


@functools.partial(jax.jit, static_argnames=("kernel_size",))
def convlstm_cell_pallas(x_nchw, h_nchw, c_nchw, weight_oihw, bias,
                         kernel_size):
    """ConvLSTMCell.forward. Inputs/outputs are NCHW like the PyTorch module."""
    kh, kw = kernel_size
    # NOTE: symmetric padding kh//2 matches PyTorch and lax SAME only for odd
    # kernel sizes (the module uses (3, 3)).
    ph, pw = kh // 2, kw // 2
    B, Cx, H, W = x_nchw.shape
    hid = h_nchw.shape[1]
    cin = Cx + hid
    kflat = cin * kh * kw
    kpad = ((kflat + 1 + 127) // 128) * 128        # +1 ones-row, pad to x128

    # --- im2col (layout plumbing in XLA, outside the kernel) ----------------
    combined = jnp.concatenate([x_nchw, h_nchw], axis=1)            # (B,cin,H,W)
    padded = jnp.pad(combined, ((0, 0), (0, 0), (ph, ph), (pw, pw)))
    taps = [padded[:, :, dy:dy + H, dx:dx + W]
            for dy in range(kh) for dx in range(kw)]                # (B,cin,H,W)
    patches = jnp.stack(taps, axis=2)                               # (B,cin,kh*kw,H,W)
    act = patches.transpose(1, 2, 0, 3, 4).reshape(kflat, B * H * W)

    n = B * H * W
    n_pad = ((n + 127) // 128) * 128
    act = jnp.concatenate(
        [act.astype(jnp.float32),
         jnp.ones((1, n), jnp.float32),                             # bias row
         jnp.zeros((kpad - kflat - 1, n), jnp.float32)], axis=0)
    act = jnp.pad(act, ((0, 0), (0, n_pad - n)))

    # Weights (4*hid, cin, kh, kw) -> (4*hid, kpad), bias folded as column kflat.
    w = weight_oihw.reshape(4 * hid, kflat).astype(jnp.float32)
    w = jnp.concatenate(
        [w, bias.reshape(4 * hid, 1).astype(jnp.float32),
         jnp.zeros((4 * hid, kpad - kflat - 1), jnp.float32)], axis=1)

    # Cell state NCHW -> (hid, B*H*W) lane-dense slab.
    c_state = c_nchw.transpose(1, 0, 2, 3).reshape(hid, n).astype(jnp.float32)
    c_state = jnp.pad(c_state, ((0, 0), (0, n_pad - n)))

    # Two lane-blocks when possible: keeps both v7x TensorCores busy; on
    # single-TC v5e/v6e the extra step costs ~0.35us and the MXU stays fed.
    grid_n = 2 if (n_pad % 256 == 0) else 1
    nblk = n_pad // grid_n

    kernel = functools.partial(_convlstm_kernel, hid=hid)
    h_slab, c_slab = pl.pallas_call(
        kernel,
        out_shape=(jax.ShapeDtypeStruct((hid, n_pad), jnp.float32),
                   jax.ShapeDtypeStruct((hid, n_pad), jnp.float32)),
        grid_spec=pltpu.PrefetchScalarGridSpec(
            num_scalar_prefetch=0,
            grid=(grid_n,),
            in_specs=[
                pl.BlockSpec((4 * hid, kpad), lambda nb: (0, 0)),
                pl.BlockSpec((kpad, nblk), lambda nb: (0, nb)),
                pl.BlockSpec((hid, nblk), lambda nb: (0, nb)),
            ],
            out_specs=[
                pl.BlockSpec((hid, nblk), lambda nb: (0, nb)),
                pl.BlockSpec((hid, nblk), lambda nb: (0, nb)),
            ],
            scratch_shapes=[pltpu.VMEM((4 * hid, nblk), jnp.float32)],
        ),
        input_output_aliases={2: 1},       # c_next overwrites c_state in place
        compiler_params=pltpu.CompilerParams(
            dimension_semantics=("parallel",)),
    )(w, act, c_state)

    # Lane-dense slabs -> NCHW to match the PyTorch module outputs.
    h_next = h_slab[:, :n].reshape(hid, B, H, W).transpose(1, 0, 2, 3)
    c_next = c_slab[:, :n].reshape(hid, B, H, W).transpose(1, 0, 2, 3)
    return h_next, c_next


def convlstm_cell_reference(x, h, c, weight, bias):
    """Pure-JAX reference mirroring the PyTorch forward exactly."""
    combined = jnp.concatenate([x, h], axis=1)
    cc = jax.lax.conv_general_dilated(
        combined, weight, window_strides=(1, 1), padding="SAME",
        dimension_numbers=("NCHW", "OIHW", "NCHW"),
        precision=jax.lax.Precision.HIGHEST)
    cc = cc + bias[None, :, None, None]
    cc_i, cc_f, cc_o, cc_g = jnp.split(cc, 4, axis=1)
    i = jax.nn.sigmoid(cc_i)
    f = jax.nn.sigmoid(cc_f)
    o = jax.nn.sigmoid(cc_o)
    g = jnp.tanh(cc_g)
    c_next = f * c + i * g
    h_next = o * jnp.tanh(c_next)
    return h_next, c_next


if __name__ == "__main__":
    # Shapes consistent with ConvLSTMCell(input_dim=4, hidden_dim=32,
    # kernel_size=(3, 3), bias=True) at batch=2, spatial=16.
    B, input_dim, hidden_dim, H, W = 2, 4, 32, 16, 16
    kernel_size = (3, 3)
    kh, kw = kernel_size
    cin = input_dim + hidden_dim

    key = jax.random.PRNGKey(0)
    k_x, k_h, k_c, k_w, k_b = jax.random.split(key, 5)

    x = jax.random.normal(k_x, (B, input_dim, H, W), jnp.float32)
    h_cur = jax.random.normal(k_h, (B, hidden_dim, H, W), jnp.float32)
    c_cur = jax.random.normal(k_c, (B, hidden_dim, H, W), jnp.float32)

    # Deterministic init mimicking nn.Conv2d default (uniform +/- 1/sqrt(fan_in)).
    fan_in = cin * kh * kw
    bound = 1.0 / jnp.sqrt(jnp.float32(fan_in))
    weight = jax.random.uniform(k_w, (4 * hidden_dim, cin, kh, kw),
                                jnp.float32, -bound, bound)
    bias = jax.random.uniform(k_b, (4 * hidden_dim,), jnp.float32,
                              -bound, bound)

    h_next, c_next = convlstm_cell_pallas(x, h_cur, c_cur, weight, bias,
                                          kernel_size=kernel_size)
    jax.block_until_ready((h_next, c_next))

    h_ref, c_ref = convlstm_cell_reference(x, h_cur, c_cur, weight, bias)
    assert jnp.allclose(h_next, h_ref, atol=1e-4, rtol=1e-4)
    assert jnp.allclose(c_next, c_ref, atol=1e-4, rtol=1e-4)

    print("KERNEL_OK")
</pallas_src>

<mosaic_0001>
module attributes {stable_mosaic.version = 11 : i64} {
  func.func @_convlstm_kernel(%arg0: i32, %arg1: memref<128x384xf32, #tpu.memory_space<vmem>>, %arg2: memref<384x256xf32, #tpu.memory_space<vmem>>, %arg3: memref<32x256xf32, #tpu.memory_space<vmem>>, %arg4: memref<32x256xf32, #tpu.memory_space<vmem>>, %arg5: memref<32x256xf32, #tpu.memory_space<vmem>>, %arg6: memref<128x256xf32, #tpu.memory_space<vmem>>) attributes {dimension_semantics = [#tpu.dimension_semantics<parallel>], iteration_bounds = array<i64: 2>, scalar_prefetch = 0 : i64, scratch_operands = 1 : i64, tpu.core_type = #tpu.core_type<tc>, window_params = [{pipeline_mode = #tpu.pipeline_mode<synchronous>, transform_indices = @transform_0, window_bounds = array<i64: 128, 384>}, {transform_indices = @transform_1, window_bounds = array<i64: 384, 256>}, {transform_indices = @transform_2, window_bounds = array<i64: 32, 256>}, {transform_indices = @transform_3, window_bounds = array<i64: 32, 256>}, {transform_indices = @transform_4, window_bounds = array<i64: 32, 256>}]} {
    %c0 = arith.constant 0 : index
    %c0_0 = arith.constant 0 : index
    %0 = vector.load %arg1[%c0, %c0_0] : memref<128x384xf32, #tpu.memory_space<vmem>>, vector<128x384xf32>
    %c0_1 = arith.constant 0 : index
    %c0_2 = arith.constant 0 : index
    %1 = vector.load %arg2[%c0_1, %c0_2] : memref<384x256xf32, #tpu.memory_space<vmem>>, vector<384x256xf32>
    %cst = arith.constant dense<0.000000e+00> : vector<128x256xf32>
    %2 = tpu.matmul %0, %1, %cst {dimension_numbers = #tpu.dot_dimension_numbers<[1], [0], [0], [1], [0, 0, 1, 1], [], []>} : vector<128x384xf32>, vector<384x256xf32>, vector<128x256xf32> -> vector<128x256xf32>
    %c0_3 = arith.constant 0 : index
    %c0_4 = arith.constant 0 : index
    %3 = vector.load %arg6[%c0_3, %c0_4] : memref<128x256xf32, #tpu.memory_space<vmem>>, vector<128x256xf32>
    tpu.vector_store %arg6[%c0_3, %c0_4], %2 {strides = array<i32>} : memref<128x256xf32, #tpu.memory_space<vmem>>, vector<128x256xf32>,
    %c0_5 = arith.constant 0 : index
    %c0_6 = arith.constant 0 : index
    %4 = vector.load %arg6[%c0_5, %c0_6] : memref<128x256xf32, #tpu.memory_space<vmem>>, vector<32x256xf32>
    %5 = arith.negf %4 : vector<32x256xf32>
    %6 = math.exp %5 : vector<32x256xf32>
    %cst_7 = arith.constant 1.000000e+00 : f32
    %7 = vector.broadcast %cst_7 : f32 to vector<32x256xf32>
    %8 = arith.addf %7, %6 : vector<32x256xf32>
    %9 = arith.divf %7, %8 : vector<32x256xf32>
    %c32 = arith.constant 32 : index
    %c0_8 = arith.constant 0 : index
    %10 = vector.load %arg6[%c32, %c0_8] : memref<128x256xf32, #tpu.memory_space<vmem>>, vector<32x256xf32>
    %11 = arith.negf %10 : vector<32x256xf32>
    %12 = math.exp %11 : vector<32x256xf32>
    %cst_9 = arith.constant 1.000000e+00 : f32
    %13 = vector.broadcast %cst_9 : f32 to vector<32x256xf32>
    %14 = arith.addf %13, %12 : vector<32x256xf32>
    %15 = arith.divf %13, %14 : vector<32x256xf32>
    %c64 = arith.constant 64 : index
    %c0_10 = arith.constant 0 : index
    %16 = vector.load %arg6[%c64, %c0_10] : memref<128x256xf32, #tpu.memory_space<vmem>>, vector<32x256xf32>
    %17 = arith.negf %16 : vector<32x256xf32>
    %18 = math.exp %17 : vector<32x256xf32>
    %cst_11 = arith.constant 1.000000e+00 : f32
    %19 = vector.broadcast %cst_11 : f32 to vector<32x256xf32>
    %20 = arith.addf %19, %18 : vector<32x256xf32>
    %21 = arith.divf %19, %20 : vector<32x256xf32>
    %c96 = arith.constant 96 : index
    %c0_12 = arith.constant 0 : index
    %22 = vector.load %arg6[%c96, %c0_12] : memref<128x256xf32, #tpu.memory_space<vmem>>, vector<32x256xf32>
    %23 = math.tanh %22 : vector<32x256xf32>
    %c0_13 = arith.constant 0 : index
    %c0_14 = arith.constant 0 : index
    %24 = vector.load %arg3[%c0_13, %c0_14] : memref<32x256xf32, #tpu.memory_space<vmem>>, vector<32x256xf32>
    %25 = arith.mulf %15, %24 : vector<32x256xf32>
    %26 = arith.mulf %9, %23 : vector<32x256xf32>
    %27 = arith.addf %25, %26 : vector<32x256xf32>
    %c0_15 = arith.constant 0 : index
    %c0_16 = arith.constant 0 : index
    %28 = vector.load %arg5[%c0_15, %c0_16] : memref<32x256xf32, #tpu.memory_space<vmem>>, vector<32x256xf32>
    tpu.vector_store %arg5[%c0_15, %c0_16], %27 {strides = array<i32>} : memref<32x256xf32, #tpu.memory_space<vmem>>, vector<32x256xf32>,
    %29 = math.tanh %27 : vector<32x256xf32>
    %30 = arith.mulf %21, %29 : vector<32x256xf32>
    %c0_17 = arith.constant 0 : index
    %c0_18 = arith.constant 0 : index
    %31 = vector.load %arg4[%c0_17, %c0_18] : memref<32x256xf32, #tpu.memory_space<vmem>>, vector<32x256xf32>
    tpu.vector_store %arg4[%c0_17, %c0_18], %30 {strides = array<i32>} : memref<32x256xf32, #tpu.memory_space<vmem>>, vector<32x256xf32>,
    return
  }
  func.func @transform_0(%arg0: i32) -> (i32, i32) {
    %c0_i32 = arith.constant 0 : i32
    %c0_i32_0 = arith.constant 0 : i32
    %c0_i32_1 = arith.constant 0 : i32
    return %c0_i32, %c0_i32_0 : i32, i32
  }
  func.func @transform_1(%arg0: i32) -> (i32, i32) {
    %c0_i32 = arith.constant 0 : i32
    %c0_i32_0 = arith.constant 0 : i32
    return %c0_i32, %arg0 : i32, i32
  }
  func.func @transform_2(%arg0: i32) -> (i32, i32) {
    %c0_i32 = arith.constant 0 : i32
    %c0_i32_0 = arith.constant 0 : i32
    return %c0_i32, %arg0 : i32, i32
  }
  func.func @transform_3(%arg0: i32) -> (i32, i32) {
    %c0_i32 = arith.constant 0 : i32
    %c0_i32_0 = arith.constant 0 : i32
    return %c0_i32, %arg0 : i32, i32
  }
  func.func @transform_4(%arg0: i32) -> (i32, i32) {
    %c0_i32 = arith.constant 0 : i32
    %c0_i32_0 = arith.constant 0 : i32
    return %c0_i32, %arg0 : i32, i32
  }
}

</mosaic_0001>

<llo_original>
// kernel: convlstm_cell_pallas.1
$region0: #{convlstm_cell_pallas.1}
  #allocation0 [shape = 'u32[]', space=smem, size = 0x4, offset = 0x4, fixed_abs, tag = 'smem constant byte address 0x4 - core index']
  #allocation1 [shape = 'u32[144,128]{1,0:T(1,128)}', space=vmem, size = 0x12000, scoped, tag = 'internal scratch']
  #allocation2 [shape = 'f32[128,256]{1,0:T(8,128)}', space=vmem, size = 0x20000, scoped, tag = 'scratch operand']
  %s0 = inlined_call_operand.vmem [shape: f32[128,384], index: 0, kind: input, shape index: {}]
  %s1 = inlined_call_operand.vmem [shape: f32[384,512], index: 1, kind: input, shape index: {}]
  %s2 = inlined_call_operand.vmem [shape: f32[32,512], index: 2, kind: input, shape index: {}, may-alias: {2,4}]
  %s3 = inlined_call_operand.vmem [shape: f32[32,512], index: 3, kind: output, shape index: {0}]
  %s4 = inlined_call_operand.vmem [shape: f32[32,512], index: 4, kind: output, shape index: {1}, may-alias: {2,4}]
  %5 = xla_tuple %s3, %s4
  %s6 = sld [smem:[#allocation0]]
  $region137: #{convlstm_cell_pallas.1} parent=0
    _
  %s8 = ssub.s32 1, %s6
  %s9 = scalar_select 0, %s8, %s6
  $region1: #{convlstm_cell_pallas.1} parent=0
    #allocation3 [shape = 'u8[786432]{0}', space=vmem, size = 0xc0000, scoped, tag = 'input window, operand 1']
    #allocation4 [shape = 'u8[65536]{0}', space=vmem, size = 0x10000, scoped, tag = 'input window, operand 2']
    #allocation5 [shape = 'u8[65536]{0}', space=vmem, size = 0x10000, scoped, tag = 'output window, operand 0']
    #allocation6 [shape = 'u8[65536]{0}', space=vmem, size = 0x10000, scoped, tag = 'output window, operand 1']
    loop: start=0, step=1, limit=4
    $region2: #{convlstm_cell_pallas.1} parent=1 // loop_pre_header
      _
    $region3: #{convlstm_cell_pallas.1} parent=1 // loop_header
      %s11 = sphi 0, %s15
      %p12 = scmp.ge.s32.totalorder %s11, 4
      %s19 = sphi 0, %s19
      %s21 = sphi 0, %s19
      %s22 = sphi 0, %s21
      %s36 = sphi 0, %s22
      %s42 = sphi 0, %s44
      %s45 = sphi 0, %s42
      %s46 = sphi 0, %s45
      %s62 = sphi 0, %s46
      %s68 = sphi 0, %s70
      %s71 = sphi 0, %s68
      %s72 = sphi 0, %s71
      %s88 = sphi 0, %s72
      %s94 = sphi 0, %s96
      %s97 = sphi 0, %s94
      %s98 = sphi 0, %s97
      %s114 = sphi 0, %s98
      %s120 = sphi 0, %s122
      %s123 = sphi 0, %s120
      %s124 = sphi 0, %s123
      %s140 = sphi 0, %s124
    $region4: #{convlstm_cell_pallas.1} parent=1 // loop_header_branch
      %14 = sbr.rel (%p12) target = $region8
    $region5: #{convlstm_cell_pallas.1} parent=1 // loop_body
      %s16 = ssub.s32 %s11, 1
      %s17 = ssub.s32 %s11, 2
      %s18 = sadd.s32 %s11, 1
      %s20 = sadd.s32 %s19, 1
      %p23 = scmp.eq.s32.totalorder %s11, 1
      %p24 = scmp.ne.s32.totalorder %s19, %s21
      %p25 = scmp.eq.s32.totalorder %s11, 0
      %p26 = por %p24, %p25
      %p27 = scmp.ne.s32.totalorder %s19, %s21
      %p28 = scmp.eq.s32.totalorder %s16, 1
      %p29 = por %p27, %p28
      %p30 = scmp.ne.s32.totalorder %s21, %s22
      %p31 = scmp.eq.s32.totalorder %s16, 0
      %p32 = por %p30, %p31
      %p33 = scmp.ne.s32.totalorder %s21, %s22
      %p34 = scmp.eq.s32.totalorder %s17, 1
      %p35 = por %p33, %p34
      %p37 = scmp.ne.s32.totalorder %s22, %s36
      %p38 = scmp.eq.s32.totalorder %s17, 0
      %p39 = por %p37, %p38
      %s40 = ssub.s32 %s11, %s18
      %p41 = scmp.eq.s32.totalorder %s40, 0
      %s43 = sadd.s32 %s42, 1
      %s44 = scalar_select %p41, %s42, %s43
      %p47 = pneg %p41
      %p48 = scmp.eq.s32.totalorder %s11, 1
      %p49 = por %p47, %p48
      %p50 = scmp.ne.s32.totalorder %s42, %s45
      %p51 = scmp.eq.s32.totalorder %s11, 0
      %p52 = por %p50, %p51
      %p53 = scmp.ne.s32.totalorder %s42, %s45
      %p54 = scmp.eq.s32.totalorder %s16, 1
      %p55 = por %p53, %p54
      %p56 = scmp.ne.s32.totalorder %s45, %s46
      %p57 = scmp.eq.s32.totalorder %s16, 0
      %p58 = por %p56, %p57
      %p59 = scmp.ne.s32.totalorder %s45, %s46
      %p60 = scmp.eq.s32.totalorder %s17, 1
      %p61 = por %p59, %p60
      %p63 = scmp.ne.s32.totalorder %s46, %s62
      %p64 = scmp.eq.s32.totalorder %s17, 0
      %p65 = por %p63, %p64
      %s66 = ssub.s32 %s11, %s18
      %p67 = scmp.eq.s32.totalorder %s66, 0
      %s69 = sadd.s32 %s68, 1
      %s70 = scalar_select %p67, %s68, %s69
      %p73 = pneg %p67
      %p74 = scmp.eq.s32.totalorder %s11, 1
      %p75 = por %p73, %p74
      %p76 = scmp.ne.s32.totalorder %s68, %s71
      %p77 = scmp.eq.s32.totalorder %s11, 0
      %p78 = por %p76, %p77
      %p79 = scmp.ne.s32.totalorder %s68, %s71
      %p80 = scmp.eq.s32.totalorder %s16, 1
      %p81 = por %p79, %p80
      %p82 = scmp.ne.s32.totalorder %s71, %s72
      %p83 = scmp.eq.s32.totalorder %s16, 0
      %p84 = por %p82, %p83
      %p85 = scmp.ne.s32.totalorder %s71, %s72
      %p86 = scmp.eq.s32.totalorder %s17, 1
      %p87 = por %p85, %p86
      %p89 = scmp.ne.s32.totalorder %s72, %s88
      %p90 = scmp.eq.s32.totalorder %s17, 0
      %p91 = por %p89, %p90
      %s92 = ssub.s32 %s11, %s18
      %p93 = scmp.eq.s32.totalorder %s92, 0
      %s95 = sadd.s32 %s94, 1
      %s96 = scalar_select %p93, %s94, %s95
      %p99 = pneg %p93
      %p100 = scmp.eq.s32.totalorder %s11, 1
      %p101 = por %p99, %p100
      %p102 = scmp.ne.s32.totalorder %s94, %s97
      %p103 = scmp.eq.s32.totalorder %s11, 0
      %p104 = por %p102, %p103
      %p105 = scmp.ne.s32.totalorder %s94, %s97
      %p106 = scmp.eq.s32.totalorder %s16, 1
      %p107 = por %p105, %p106
      %p108 = scmp.ne.s32.totalorder %s97, %s98
      %p109 = scmp.eq.s32.totalorder %s16, 0
      %p110 = por %p108, %p109
      %p111 = scmp.ne.s32.totalorder %s97, %s98
      %p112 = scmp.eq.s32.totalorder %s17, 1
      %p113 = por %p111, %p112
      %p115 = scmp.ne.s32.totalorder %s98, %s114
      %p116 = scmp.eq.s32.totalorder %s17, 0
      %p117 = por %p115, %p116
      %s118 = ssub.s32 %s11, %s18
      %p119 = scmp.eq.s32.totalorder %s118, 0
      %s121 = sadd.s32 %s120, 1
      %s122 = scalar_select %p119, %s120, %s121
      %p125 = pneg %p119
      %p126 = scmp.eq.s32.totalorder %s11, 1
      %p127 = por %p125, %p126
      %p128 = scmp.ne.s32.totalorder %s120, %s123
      %p129 = scmp.eq.s32.totalorder %s11, 0
      %p130 = por %p128, %p129
      %p131 = scmp.ne.s32.totalorder %s120, %s123
      %p132 = scmp.eq.s32.totalorder %s16, 1
      %p133 = por %p131, %p132
      %p134 = scmp.ne.s32.totalorder %s123, %s124
      %p135 = scmp.eq.s32.totalorder %s16, 0
      %p136 = por %p134, %p135
      %p137 = scmp.ne.s32.totalorder %s123, %s124
      %p138 = scmp.eq.s32.totalorder %s17, 1
      %p139 = por %p137, %p138
      %p141 = scmp.ne.s32.totalorder %s124, %s140
      %p142 = scmp.eq.s32.totalorder %s17, 0
      %p143 = por %p141, %p142
      %p144 = scmp.le.s32.totalorder 1, %s11
      %p145 = scmp.lt.s32.totalorder %s11, 3
      %p146 = pnand %p144, %p145
      %p147 = pneg %p146
      // Predicated region
      $region9: #{convlstm_cell_pallas.1} parent=5 // pred_check
        _
      $region10: #{convlstm_cell_pallas.1} parent=5 // pred_check_branch
        %149 = sbr.rel (%p146) target = $region12
      $region11: #{convlstm_cell_pallas.1} parent=5 // pred_region
        %s150 = ssub.s32 %s11, 1
        // Predicated region
        $region13: #{convlstm_cell_pallas.1} parent=11 // pred_check
          %p151 = pneg %p32
        $region14: #{convlstm_cell_pallas.1} parent=11 // pred_check_branch
          %153 = sbr.rel (%p151) target = $region16
        $region15: #{convlstm_cell_pallas.1} parent=11 // pred_region
          _
        $region16: #{convlstm_cell_pallas.1} parent=11 // pred_fallthru
          _
      $region12: #{convlstm_cell_pallas.1} parent=5 // pred_fallthru
        _
      %p154 = scmp.lt.s32.totalorder %s11, 2
      // Predicated region
      $region17: #{convlstm_cell_pallas.1} parent=5 // pred_check
        %p155 = pneg %p154
      $region18: #{convlstm_cell_pallas.1} parent=5 // pred_check_branch
        %157 = sbr.rel (%p155) target = $region20
      $region19: #{convlstm_cell_pallas.1} parent=5 // pred_region
        // Predicated region
        $region21: #{convlstm_cell_pallas.1} parent=19 // pred_check
          %p158 = pneg %p52
        $region22: #{convlstm_cell_pallas.1} parent=19 // pred_check_branch
          %160 = sbr.rel (%p158) target = $region24
        $region23: #{convlstm_cell_pallas.1} parent=19 // pred_region
          %s161 = sand.u32 %s42, 1
          %s162 = sand.u32 %s42, 1
          %s163 = smul.addr %s162, 768
          %s164 = scalar_lea.vmem [#allocation3], %s163
          %s165 = smul.u32 2, %s11
          %s166 = smul.addr %s165, 8
          %s167 = scalar_lea.vmem %s1, %s166
          // Predicated region
          $region25: #{convlstm_cell_pallas.1} parent=23 // pred_check
            _
          $region26: #{convlstm_cell_pallas.1} parent=23 // pred_check_branch
            %169 = sbr.rel (0) target = $region28
          $region27: #{convlstm_cell_pallas.1} parent=23 // pred_region
            // Predicated region
            $region29: #{convlstm_cell_pallas.1} parent=27 // pred_check
              _
            $region30: #{convlstm_cell_pallas.1} parent=27 // pred_check_branch
              %171 = sbr.rel (0) target = $region32
            $region31: #{convlstm_cell_pallas.1} parent=27 // pred_region
              loop: start=0, step=1, limit=1
              $region33: #{convlstm_cell_pallas.1} parent=31 // loop_pre_header
                _
              $region34: #{convlstm_cell_pallas.1} parent=31 // loop_header
                %s173 = sphi 0, %s177
                %p174 = scmp.ge.s32.totalorder %s173, 1
                %s178 = sphi %s167, %s167
                %s179 = sphi %s164, %s164
              $region35: #{convlstm_cell_pallas.1} parent=31 // loop_header_branch
                %176 = sbr.rel (%p174) target = $region39
              $region36: #{convlstm_cell_pallas.1} parent=31 // loop_body
                %v180 = vld [vmem:[%s178] sm:$0xff]
                %181 = vst [vmem:[%s179] sm:$0xff] %v180
                %v182 = vld [vmem:[%s178 + $0x8] sm:$0xff]
                %183 = vst [vmem:[%s179 + $0x8] sm:$0xff] %v182
                %v184 = vld [vmem:[%s178 + $0x20] sm:$0xff]
                %185 = vst [vmem:[%s179 + $0x10] sm:$0xff] %v184
                %v186 = vld [vmem:[%s178 + $0x28] sm:$0xff]
                %187 = vst [vmem:[%s179 + $0x18] sm:$0xff] %v186
                %v188 = vld [vmem:[%s178 + $0x40] sm:$0xff]
                %189 = vst [vmem:[%s179 + $0x20] sm:$0xff] %v188
                %v190 = vld [vmem:[%s178 + $0x48] sm:$0xff]
                %191 = vst [vmem:[%s179 + $0x28] sm:$0xff] %v190
                %v192 = vld [vmem:[%s178 + $0x60] sm:$0xff]
                %193 = vst [vmem:[%s179 + $0x30] sm:$0xff] %v192
                %v194 = vld [vmem:[%s178 + $0x68] sm:$0xff]
                %195 = vst [vmem:[%s179 + $0x38] sm:$0xff] %v194
                %v196 = vld [vmem:[%s178 + $0x80] sm:$0xff]
                %197 = vst [vmem:[%s179 + $0x40] sm:$0xff] %v196
                %v198 = vld [vmem:[%s178 + $0x88] sm:$0xff]
                %199 = vst [vmem:[%s179 + $0x48] sm:$0xff] %v198
                %v200 = vld [vmem:[%s178 + $0xa0] sm:$0xff]
                %201 = vst [vmem:[%s179 + $0x50] sm:$0xff] %v200
                %v202 = vld [vmem:[%s178 + $0xa8] sm:$0xff]
                %203 = vst [vmem:[%s179 + $0x58] sm:$0xff] %v202
                %v204 = vld [vmem:[%s178 + $0xc0] sm:$0xff]
                %205 = vst [vmem:[%s179 + $0x60] sm:$0xff] %v204
                %v206 = vld [vmem:[%s178 + $0xc8] sm:$0xff]
                %207 = vst [vmem:[%s179 + $0x68] sm:$0xff] %v206
                %v208 = vld [vmem:[%s178 + $0xe0] sm:$0xff]
                %209 = vst [vmem:[%s179 + $0x70] sm:$0xff] %v208
                %v210 = vld [vmem:[%s178 + $0xe8] sm:$0xff]
                %211 = vst [vmem:[%s179 + $0x78] sm:$0xff] %v210
                %v212 = vld [vmem:[%s178 + $0x100] sm:$0xff]
                %213 = vst [vmem:[%s179 + $0x80] sm:$0xff] %v212
                %v214 = vld [vmem:[%s178 + $0x108] sm:$0xff]
                %215 = vst [vmem:[%s179 + $0x88] sm:$0xff] %v214
                %v216 = vld [vmem:[%s178 + $0x120] sm:$0xff]
                %217 = vst [vmem:[%s179 + $0x90] sm:$0xff] %v216
                %v218 = vld [vmem:[%s178 + $0x128] sm:$0xff]
                %219 = vst [vmem:[%s179 + $0x98] sm:$0xff] %v218
                %v220 = vld [vmem:[%s178 + $0x140] sm:$0xff]
                %221 = vst [vmem:[%s179 + $0xa0] sm:$0xff] %v220
                %v222 = vld [vmem:[%s178 + $0x148] sm:$0xff]
                %223 = vst [vmem:[%s179 + $0xa8] sm:$0xff] %v222
                %v224 = vld [vmem:[%s178 + $0x160] sm:$0xff]
                %225 = vst [vmem:[%s179 + $0xb0] sm:$0xff] %v224
                %v226 = vld [vmem:[%s178 + $0x168] sm:$0xff]
                %227 = vst [vmem:[%s179 + $0xb8] sm:$0xff] %v226
                %v228 = vld [vmem:[%s178 + $0x180] sm:$0xff]
                %229 = vst [vmem:[%s179 + $0xc0] sm:$0xff] %v228
                %v230 = vld [vmem:[%s178 + $0x188] sm:$0xff]
                %231 = vst [vmem:[%s179 + $0xc8] sm:$0xff] %v230
                %v232 = vld [vmem:[%s178 + $0x1a0] sm:$0xff]
                %233 = vst [vmem:[%s179 + $0xd0] sm:$0xff] %v232
                %v234 = vld [vmem:[%s178 + $0x1a8] sm:$0xff]
                %235 = vst [vmem:[%s179 + $0xd8] sm:$0xff] %v234
                %v236 = vld [vmem:[%s178 + $0x1c0] sm:$0xff]
                %237 = vst [vmem:[%s179 + $0xe0] sm:$0xff] %v236
                %v238 = vld [vmem:[%s178 + $0x1c8] sm:$0xff]
                %239 = vst [vmem:[%s179 + $0xe8] sm:$0xff] %v238
                %v240 = vld [vmem:[%s178 + $0x1e0] sm:$0xff]
                %241 = vst [vmem:[%s179 + $0xf0] sm:$0xff] %v240
                %v242 = vld [vmem:[%s178 + $0x1e8] sm:$0xff]
                %243 = vst [vmem:[%s179 + $0xf8] sm:$0xff] %v242
                %v244 = vld [vmem:[%s178 + $0x200] sm:$0xff]
                %245 = vst [vmem:[%s179 + $0x100] sm:$0xff] %v244
                %v246 = vld [vmem:[%s178 + $0x208] sm:$0xff]
                %247 = vst [vmem:[%s179 + $0x108] sm:$0xff] %v246
                %v248 = vld [vmem:[%s178 + $0x220] sm:$0xff]
                %249 = vst [vmem:[%s179 + $0x110] sm:$0xff] %v248
                %v250 = vld [vmem:[%s178 + $0x228] sm:$0xff]
                %251 = vst [vmem:[%s179 + $0x118] sm:$0xff] %v250
                %v252 = vld [vmem:[%s178 + $0x240] sm:$0xff]
                %253 = vst [vmem:[%s179 + $0x120] sm:$0xff] %v252
                %v254 = vld [vmem:[%s178 + $0x248] sm:$0xff]
                %255 = vst [vmem:[%s179 + $0x128] sm:$0xff] %v254
                %v256 = vld [vmem:[%s178 + $0x260] sm:$0xff]
                %257 = vst [vmem:[%s179 + $0x130] sm:$0xff] %v256
                %v258 = vld [vmem:[%s178 + $0x268] sm:$0xff]
                %259 = vst [vmem:[%s179 + $0x138] sm:$0xff] %v258
                %v260 = vld [vmem:[%s178 + $0x280] sm:$0xff]
                %261 = vst [vmem:[%s179 + $0x140] sm:$0xff] %v260
                %v262 = vld [vmem:[%s178 + $0x288] sm:$0xff]
                %263 = vst [vmem:[%s179 + $0x148] sm:$0xff] %v262
                %v264 = vld [vmem:[%s178 + $0x2a0] sm:$0xff]
                %265 = vst [vmem:[%s179 + $0x150] sm:$0xff] %v264
                %v266 = vld [vmem:[%s178 + $0x2a8] sm:$0xff]
                %267 = vst [vmem:[%s179 + $0x158] sm:$0xff] %v266
                %v268 = vld [vmem:[%s178 + $0x2c0] sm:$0xff]
                %269 = vst [vmem:[%s179 + $0x160] sm:$0xff] %v268
                %v270 = vld [vmem:[%s178 + $0x2c8] sm:$0xff]
                %271 = vst [vmem:[%s179 + $0x168] sm:$0xff] %v270
                %v272 = vld [vmem:[%s178 + $0x2e0] sm:$0xff]
                %273 = vst [vmem:[%s179 + $0x170] sm:$0xff] %v272
                %v274 = vld [vmem:[%s178 + $0x2e8] sm:$0xff]
                %275 = vst [vmem:[%s179 + $0x178] sm:$0xff] %v274
                %v276 = vld [vmem:[%s178 + $0x300] sm:$0xff]
                %277 = vst [vmem:[%s179 + $0x180] sm:$0xff] %v276
                %v278 = vld [vmem:[%s178 + $0x308] sm:$0xff]
                %279 = vst [vmem:[%s179 + $0x188] sm:$0xff] %v278
                %v280 = vld [vmem:[%s178 + $0x320] sm:$0xff]
                %281 = vst [vmem:[%s179 + $0x190] sm:$0xff] %v280
                %v282 = vld [vmem:[%s178 + $0x328] sm:$0xff]
                %283 = vst [vmem:[%s179 + $0x198] sm:$0xff] %v282
                %v284 = vld [vmem:[%s178 + $0x340] sm:$0xff]
                %285 = vst [vmem:[%s179 + $0x1a0] sm:$0xff] %v284
                %v286 = vld [vmem:[%s178 + $0x348] sm:$0xff]
                %287 = vst [vmem:[%s179 + $0x1a8] sm:$0xff] %v286
                %v288 = vld [vmem:[%s178 + $0x360] sm:$0xff]
                %289 = vst [vmem:[%s179 + $0x1b0] sm:$0xff] %v288
                %v290 = vld [vmem:[%s178 + $0x368] sm:$0xff]
                %291 = vst [vmem:[%s179 + $0x1b8] sm:$0xff] %v290
                %v292 = vld [vmem:[%s178 + $0x380] sm:$0xff]
                %293 = vst [vmem:[%s179 + $0x1c0] sm:$0xff] %v292
                %v294 = vld [vmem:[%s178 + $0x388] sm:$0xff]
                %295 = vst [vmem:[%s179 + $0x1c8] sm:$0xff] %v294
                %v296 = vld [vmem:[%s178 + $0x3a0] sm:$0xff]
                %297 = vst [vmem:[%s179 + $0x1d0] sm:$0xff] %v296
                %v298 = vld [vmem:[%s178 + $0x3a8] sm:$0xff]
                %299 = vst [vmem:[%s179 + $0x1d8] sm:$0xff] %v298
                %v300 = vld [vmem:[%s178 + $0x3c0] sm:$0xff]
                %301 = vst [vmem:[%s179 + $0x1e0] sm:$0xff] %v300
                %v302 = vld [vmem:[%s178 + $0x3c8] sm:$0xff]
                %303 = vst [vmem:[%s179 + $0x1e8] sm:$0xff] %v302
                %v304 = vld [vmem:[%s178 + $0x3e0] sm:$0xff]
                %305 = vst [vmem:[%s179 + $0x1f0] sm:$0xff] %v304
                %v306 = vld [vmem:[%s178 + $0x3e8] sm:$0xff]
                %307 = vst [vmem:[%s179 + $0x1f8] sm:$0xff] %v306
                %v308 = vld [vmem:[%s178 + $0x400] sm:$0xff]
                %309 = vst [vmem:[%s179 + $0x200] sm:$0xff] %v308
                %v310 = vld [vmem:[%s178 + $0x408] sm:$0xff]
                %311 = vst [vmem:[%s179 + $0x208] sm:$0xff] %v310
                %v312 = vld [vmem:[%s178 + $0x420] sm:$0xff]
                %313 = vst [vmem:[%s179 + $0x210] sm:$0xff] %v312
                %v314 = vld [vmem:[%s178 + $0x428] sm:$0xff]
                %315 = vst [vmem:[%s179 + $0x218] sm:$0xff] %v314
                %v316 = vld [vmem:[%s178 + $0x440] sm:$0xff]
                %317 = vst [vmem:[%s179 + $0x220] sm:$0xff] %v316
                %v318 = vld [vmem:[%s178 + $0x448] sm:$0xff]
                %319 = vst [vmem:[%s179 + $0x228] sm:$0xff] %v318
                %v320 = vld [vmem:[%s178 + $0x460] sm:$0xff]
                %321 = vst [vmem:[%s179 + $0x230] sm:$0xff] %v320
                %v322 = vld [vmem:[%s178 + $0x468] sm:$0xff]
                %323 = vst [vmem:[%s179 + $0x238] sm:$0xff] %v322
                %v324 = vld [vmem:[%s178 + $0x480] sm:$0xff]
                %325 = vst [vmem:[%s179 + $0x240] sm:$0xff] %v324
                %v326 = vld [vmem:[%s178 + $0x488] sm:$0xff]
                %327 = vst [vmem:[%s179 + $0x248] sm:$0xff] %v326
                %v328 = vld [vmem:[%s178 + $0x4a0] sm:$0xff]
                %329 = vst [vmem:[%s179 + $0x250] sm:$0xff] %v328
                %v330 = vld [vmem:[%s178 + $0x4a8] sm:$0xff]
                %331 = vst [vmem:[%s179 + $0x258] sm:$0xff] %v330
                %v332 = vld [vmem:[%s178 + $0x4c0] sm:$0xff]
                %333 = vst [vmem:[%s179 + $0x260] sm:$0xff] %v332
                %v334 = vld [vmem:[%s178 + $0x4c8] sm:$0xff]
                %335 = vst [vmem:[%s179 + $0x268] sm:$0xff] %v334
                %v336 = vld [vmem:[%s178 + $0x4e0] sm:$0xff]
                %337 = vst [vmem:[%s179 + $0x270] sm:$0xff] %v336
                %v338 = vld [vmem:[%s178 + $0x4e8] sm:$0xff]
                %339 = vst [vmem:[%s179 + $0x278] sm:$0xff] %v338
                %v340 = vld [vmem:[%s178 + $0x500] sm:$0xff]
                %341 = vst [vmem:[%s179 + $0x280] sm:$0xff] %v340
                %v342 = vld [vmem:[%s178 + $0x508] sm:$0xff]
                %343 = vst [vmem:[%s179 + $0x288] sm:$0xff] %v342
                %v344 = vld [vmem:[%s178 + $0x520] sm:$0xff]
                %345 = vst [vmem:[%s179 + $0x290] sm:$0xff] %v344
                %v346 = vld [vmem:[%s178 + $0x528] sm:$0xff]
                %347 = vst [vmem:[%s179 + $0x298] sm:$0xff] %v346
                %v348 = vld [vmem:[%s178 + $0x540] sm:$0xff]
                %349 = vst [vmem:[%s179 + $0x2a0] sm:$0xff] %v348
                %v350 = vld [vmem:[%s178 + $0x548] sm:$0xff]
                %351 = vst [vmem:[%s179 + $0x2a8] sm:$0xff] %v350
                %v352 = vld [vmem:[%s178 + $0x560] sm:$0xff]
                %353 = vst [vmem:[%s179 + $0x2b0] sm:$0xff] %v352
                %v354 = vld [vmem:[%s178 + $0x568] sm:$0xff]
                %355 = vst [vmem:[%s179 + $0x2b8] sm:$0xff] %v354
                %v356 = vld [vmem:[%s178 + $0x580] sm:$0xff]
                %357 = vst [vmem:[%s179 + $0x2c0] sm:$0xff] %v356
                %v358 = vld [vmem:[%s178 + $0x588] sm:$0xff]
                %359 = vst [vmem:[%s179 + $0x2c8] sm:$0xff] %v358
                %v360 = vld [vmem:[%s178 + $0x5a0] sm:$0xff]
                %361 = vst [vmem:[%s179 + $0x2d0] sm:$0xff] %v360
                %v362 = vld [vmem:[%s178 + $0x5a8] sm:$0xff]
                %363 = vst [vmem:[%s179 + $0x2d8] sm:$0xff] %v362
                %v364 = vld [vmem:[%s178 + $0x5c0] sm:$0xff]
                %365 = vst [vmem:[%s179 + $0x2e0] sm:$0xff] %v364
                %v366 = vld [vmem:[%s178 + $0x5c8] sm:$0xff]
                %367 = vst [vmem:[%s179 + $0x2e8] sm:$0xff] %v366
                %v368 = vld [vmem:[%s178 + $0x5e0] sm:$0xff]
                %369 = vst [vmem:[%s179 + $0x2f0] sm:$0xff] %v368
                %v370 = vld [vmem:[%s178 + $0x5e8] sm:$0xff]
                %371 = vst [vmem:[%s179 + $0x2f8] sm:$0xff] %v370
              $region37: #{convlstm_cell_pallas.1} parent=31 // loop_footer
                %s177 = sadd.s32 1, %s173
              $region38: #{convlstm_cell_pallas.1} parent=31 // loop_footer_branch
                %172 = sbr.rel target = $region34
              $region39: #{convlstm_cell_pallas.1} parent=31 // loop_exit
                _
            $region32: #{convlstm_cell_pallas.1} parent=27 // pred_fallthru
              _
            // Predicated region
            $region40: #{convlstm_cell_pallas.1} parent=27 // pred_check
              _
            $region41: #{convlstm_cell_pallas.1} parent=27 // pred_check_branch
              %373 = sbr.rel target = $region43
            $region42: #{convlstm_cell_pallas.1} parent=27 // pred_region
              _
            $region43: #{convlstm_cell_pallas.1} parent=27 // pred_fallthru
              _
          $region28: #{convlstm_cell_pallas.1} parent=23 // pred_fallthru
            _
          %374 = vnop
        $region24: #{convlstm_cell_pallas.1} parent=19 // pred_fallthru
          _
        // Predicated region
        $region44: #{convlstm_cell_pallas.1} parent=19 // pred_check
          %p375 = pneg %p78
        $region45: #{convlstm_cell_pallas.1} parent=19 // pred_check_branch
          %377 = sbr.rel (%p375) target = $region47
        $region46: #{convlstm_cell_pallas.1} parent=19 // pred_region
          %s378 = sand.u32 %s68, 1
          %s379 = sand.u32 %s68, 1
          %s380 = smul.addr %s379, 64
          %s381 = scalar_lea.vmem [#allocation4], %s380
          %s382 = smul.u32 2, %s11
          %s383 = smul.addr %s382, 8
          %s384 = scalar_lea.vmem %s2, %s383
          // Predicated region
          $region48: #{convlstm_cell_pallas.1} parent=46 // pred_check
            _
          $region49: #{convlstm_cell_pallas.1} parent=46 // pred_check_branch
            %386 = sbr.rel (0) target = $region51
          $region50: #{convlstm_cell_pallas.1} parent=46 // pred_region
            // Predicated region
            $region52: #{convlstm_cell_pallas.1} parent=50 // pred_check
              _
            $region53: #{convlstm_cell_pallas.1} parent=50 // pred_check_branch
              %388 = sbr.rel (0) target = $region55
            $region54: #{convlstm_cell_pallas.1} parent=50 // pred_region
              loop: start=0, step=1, limit=1
              $region56: #{convlstm_cell_pallas.1} parent=54 // loop_pre_header
                _
              $region57: #{convlstm_cell_pallas.1} parent=54 // loop_header
                %s390 = sphi 0, %s394
                %p391 = scmp.ge.s32.totalorder %s390, 1
                %s395 = sphi %s384, %s384
                %s396 = sphi %s381, %s381
              $region58: #{convlstm_cell_pallas.1} parent=54 // loop_header_branch
                %393 = sbr.rel (%p391) target = $region62
              $region59: #{convlstm_cell_pallas.1} parent=54 // loop_body
                %v397 = vld [vmem:[%s395] sm:$0xff]
                %398 = vst [vmem:[%s396] sm:$0xff] %v397
                %v399 = vld [vmem:[%s395 + $0x8] sm:$0xff]
                %400 = vst [vmem:[%s396 + $0x8] sm:$0xff] %v399
                %v401 = vld [vmem:[%s395 + $0x20] sm:$0xff]
                %402 = vst [vmem:[%s396 + $0x10] sm:$0xff] %v401
                %v403 = vld [vmem:[%s395 + $0x28] sm:$0xff]
                %404 = vst [vmem:[%s396 + $0x18] sm:$0xff] %v403
                %v405 = vld [vmem:[%s395 + $0x40] sm:$0xff]
                %406 = vst [vmem:[%s396 + $0x20] sm:$0xff] %v405
                %v407 = vld [vmem:[%s395 + $0x48] sm:$0xff]
                %408 = vst [vmem:[%s396 + $0x28] sm:$0xff] %v407
                %v409 = vld [vmem:[%s395 + $0x60] sm:$0xff]
                %410 = vst [vmem:[%s396 + $0x30] sm:$0xff] %v409
                %v411 = vld [vmem:[%s395 + $0x68] sm:$0xff]
                %412 = vst [vmem:[%s396 + $0x38] sm:$0xff] %v411
              $region60: #{convlstm_cell_pallas.1} parent=54 // loop_footer
                %s394 = sadd.s32 1, %s390
              $region61: #{convlstm_cell_pallas.1} parent=54 // loop_footer_branch
                %389 = sbr.rel target = $region57
              $region62: #{convlstm_cell_pallas.1} parent=54 // loop_exit
                _
            $region55: #{convlstm_cell_pallas.1} parent=50 // pred_fallthru
              _
            // Predicated region
            $region63: #{convlstm_cell_pallas.1} parent=50 // pred_check
              _
            $region64: #{convlstm_cell_pallas.1} parent=50 // pred_check_branch
              %414 = sbr.rel target = $region66
            $region65: #{convlstm_cell_pallas.1} parent=50 // pred_region
              _
            $region66: #{convlstm_cell_pallas.1} parent=50 // pred_fallthru
              _
          $region51: #{convlstm_cell_pallas.1} parent=46 // pred_fallthru
            _
          %415 = vnop
        $region47: #{convlstm_cell_pallas.1} parent=19 // pred_fallthru
          _
      $region20: #{convlstm_cell_pallas.1} parent=5 // pred_fallthru
        _
      %p416 = scmp.le.s32.totalorder 1, %s11
      %p417 = scmp.lt.s32.totalorder %s11, 3
      %p418 = pnand %p416, %p417
      %p419 = pneg %p418
      // Predicated region
      $region67: #{convlstm_cell_pallas.1} parent=5 // pred_check
        _
      $region68: #{convlstm_cell_pallas.1} parent=5 // pred_check_branch
        %421 = sbr.rel (%p418) target = $region70
      $region69: #{convlstm_cell_pallas.1} parent=5 // pred_region
        %s422 = ssub.s32 %s11, 1
        %s423 = sand.u32 %s45, 1
        %s424 = sand.u32 %s45, 1
        %s425 = smul.addr %s424, 768
        %s426 = scalar_lea.vmem [#allocation3], %s425
        // Predicated region
        $region71: #{convlstm_cell_pallas.1} parent=69 // pred_check
          %p427 = pneg %p58
        $region72: #{convlstm_cell_pallas.1} parent=69 // pred_check_branch
          %429 = sbr.rel (%p427) target = $region74
        $region73: #{convlstm_cell_pallas.1} parent=69 // pred_region
          _
        $region74: #{convlstm_cell_pallas.1} parent=69 // pred_fallthru
          _
        %s430 = sand.u32 %s71, 1
        %s431 = sand.u32 %s71, 1
        %s432 = smul.addr %s431, 64
        %s433 = scalar_lea.vmem [#allocation4], %s432
        // Predicated region
        $region75: #{convlstm_cell_pallas.1} parent=69 // pred_check
          %p434 = pneg %p84
        $region76: #{convlstm_cell_pallas.1} parent=69 // pred_check_branch
          %436 = sbr.rel (%p434) target = $region78
        $region77: #{convlstm_cell_pallas.1} parent=69 // pred_region
          _
        $region78: #{convlstm_cell_pallas.1} parent=69 // pred_fallthru
          _
        %p437 = pneg %p32
        %p438 = pneg %p29
        %s439 = sand.u32 %s45, 1
        %s440 = sand.u32 %s45, 1
        %s441 = smul.addr %s440, 768
        %s442 = scalar_lea.vmem [#allocation3], %s441
        %p443 = pneg %p58
        %p444 = pneg %p55
        %s445 = sand.u32 %s71, 1
        %s446 = sand.u32 %s71, 1
        %s447 = smul.addr %s446, 64
        %s448 = scalar_lea.vmem [#allocation4], %s447
        %p449 = pneg %p84
        %p450 = pneg %p81
        %p451 = pneg %p110
        %p452 = pneg %p107
        %s453 = sand.u32 %s97, 1
        %s454 = sand.u32 %s97, 1
        %s455 = smul.addr %s454, 64
        %s456 = scalar_lea.vmem [#allocation5], %s455
        %p457 = pneg %p136
        %p458 = pneg %p133
        %s459 = sand.u32 %s123, 1
        %s460 = sand.u32 %s123, 1
        %s461 = smul.addr %s460, 64
        %s462 = scalar_lea.vmem [#allocation6], %s461
        %s463 = smul.u32 2, %s16
        %s464 = smul.u32 2, %s16
        %s465 = smul.u32 2, %s16
        %s466 = smul.u32 2, %s16
        %v467 = vld [vmem:[%s0] sm:$0xff]
        %v468 = vld [vmem:[%s0 + $0x8] sm:$0xff]
        %v469 = vld [vmem:[%s0 + $0x10] sm:$0xff]
        %v470 = vld [vmem:[%s0 + $0x18] sm:$0xff]
        %v471 = vld [vmem:[%s0 + $0x20] sm:$0xff]
        %v472 = vld [vmem:[%s0 + $0x28] sm:$0xff]
        %v473 = vld [vmem:[%s0 + $0x30] sm:$0xff]
        %v474 = vld [vmem:[%s0 + $0x38] sm:$0xff]
        %v475 = vld [vmem:[%s0 + $0x40] sm:$0xff]
        %v476 = vld [vmem:[%s0 + $0x48] sm:$0xff]
        %v477 = vld [vmem:[%s0 + $0x50] sm:$0xff]
        %v478 = vld [vmem:[%s0 + $0x58] sm:$0xff]
        %v479 = vld [vmem:[%s0 + $0x60] sm:$0xff]
        %v480 = vld [vmem:[%s0 + $0x68] sm:$0xff]
        %v481 = vld [vmem:[%s0 + $0x70] sm:$0xff]
        %v482 = vld [vmem:[%s0 + $0x78] sm:$0xff]
        %v483 = vld [vmem:[%s0 + $0x80] sm:$0xff]
        %v484 = vld [vmem:[%s0 + $0x88] sm:$0xff]
        %v485 = vld [vmem:[%s0 + $0x90] sm:$0xff]
        %v486 = vld [vmem:[%s0 + $0x98] sm:$0xff]
        %v487 = vld [vmem:[%s0 + $0xa0] sm:$0xff]
        %v488 = vld [vmem:[%s0 + $0xa8] sm:$0xff]
        %v489 = vld [vmem:[%s0 + $0xb0] sm:$0xff]
        %v490 = vld [vmem:[%s0 + $0xb8] sm:$0xff]
        %v491 = vld [vmem:[%s0 + $0xc0] sm:$0xff]
        %v492 = vld [vmem:[%s0 + $0xc8] sm:$0xff]
        %v493 = vld [vmem:[%s0 + $0xd0] sm:$0xff]
        %v494 = vld [vmem:[%s0 + $0xd8] sm:$0xff]
        %v495 = vld [vmem:[%s0 + $0xe0] sm:$0xff]
        %v496 = vld [vmem:[%s0 + $0xe8] sm:$0xff]
        %v497 = vld [vmem:[%s0 + $0xf0] sm:$0xff]
        %v498 = vld [vmem:[%s0 + $0xf8] sm:$0xff]
        %v499 = vld [vmem:[%s0 + $0x100] sm:$0xff]
        %v500 = vld [vmem:[%s0 + $0x108] sm:$0xff]
        %v501 = vld [vmem:[%s0 + $0x110] sm:$0xff]
        %v502 = vld [vmem:[%s0 + $0x118] sm:$0xff]
        %v503 = vld [vmem:[%s0 + $0x120] sm:$0xff]
        %v504 = vld [vmem:[%s0 + $0x128] sm:$0xff]
        %v505 = vld [vmem:[%s0 + $0x130] sm:$0xff]
        %v506 = vld [vmem:[%s0 + $0x138] sm:$0xff]
        %v507 = vld [vmem:[%s0 + $0x140] sm:$0xff]
        %v508 = vld [vmem:[%s0 + $0x148] sm:$0xff]
        %v509 = vld [vmem:[%s0 + $0x150] sm:$0xff]
        %v510 = vld [vmem:[%s0 + $0x158] sm:$0xff]
        %v511 = vld [vmem:[%s0 + $0x160] sm:$0xff]
        %v512 = vld [vmem:[%s0 + $0x168] sm:$0xff]
        %v513 = vld [vmem:[%s0 + $0x170] sm:$0xff]
        %v514 = vld [vmem:[%s0 + $0x178] sm:$0xff]
        %v515 = vld [vmem:[%s426] sm:$0xff]
        %v516 = vld [vmem:[%s426 + $0x8] sm:$0xff]
        %v517 = vld [vmem:[%s426 + $0x10] sm:$0xff]
        %v518 = vld [vmem:[%s426 + $0x18] sm:$0xff]
        %v519 = vld [vmem:[%s426 + $0x20] sm:$0xff]
        %v520 = vld [vmem:[%s426 + $0x28] sm:$0xff]
        %v521 = vld [vmem:[%s426 + $0x30] sm:$0xff]
        %v522 = vld [vmem:[%s426 + $0x38] sm:$0xff]
        %v523 = vld [vmem:[%s426 + $0x40] sm:$0xff]
        %v524 = vld [vmem:[%s426 + $0x48] sm:$0xff]
        %v525 = vld [vmem:[%s426 + $0x50] sm:$0xff]
        %v526 = vld [vmem:[%s426 + $0x58] sm:$0xff]
        %v527 = vld [vmem:[%s426 + $0x60] sm:$0xff]
        %v528 = vld [vmem:[%s426 + $0x68] sm:$0xff]
        %v529 = vld [vmem:[%s426 + $0x70] sm:$0xff]
        %v530 = vld [vmem:[%s426 + $0x78] sm:$0xff]
        %v531 = vld [vmem:[%s426 + $0x80] sm:$0xff]
        %v532 = vld [vmem:[%s426 + $0x88] sm:$0xff]
        %v533 = vld [vmem:[%s426 + $0x90] sm:$0xff]
        %v534 = vld [vmem:[%s426 + $0x98] sm:$0xff]
        %v535 = vld [vmem:[%s426 + $0xa0] sm:$0xff]
        %v536 = vld [vmem:[%s426 + $0xa8] sm:$0xff]
        %v537 = vld [vmem:[%s426 + $0xb0] sm:$0xff]
        %v538 = vld [vmem:[%s426 + $0xb8] sm:$0xff]
        %v539 = vld [vmem:[%s426 + $0xc0] sm:$0xff]
        %v540 = vld [vmem:[%s426 + $0xc8] sm:$0xff]
        %v541 = vld [vmem:[%s426 + $0xd0] sm:$0xff]
        %v542 = vld [vmem:[%s426 + $0xd8] sm:$0xff]
        %v543 = vld [vmem:[%s426 + $0xe0] sm:$0xff]
        %v544 = vld [vmem:[%s426 + $0xe8] sm:$0xff]
        %v545 = vld [vmem:[%s426 + $0xf0] sm:$0xff]
        %v546 = vld [vmem:[%s426 + $0xf8] sm:$0xff]
        %v547 = vld [vmem:[%s426 + $0x100] sm:$0xff]
        %v548 = vld [vmem:[%s426 + $0x108] sm:$0xff]
        %v549 = vld [vmem:[%s426 + $0x110] sm:$0xff]
        %v550 = vld [vmem:[%s426 + $0x118] sm:$0xff]
        %v551 = vld [vmem:[%s426 + $0x120] sm:$0xff]
        %v552 = vld [vmem:[%s426 + $0x128] sm:$0xff]
        %v553 = vld [vmem:[%s426 + $0x130] sm:$0xff]
        %v554 = vld [vmem:[%s426 + $0x138] sm:$0xff]
        %v555 = vld [vmem:[%s426 + $0x140] sm:$0xff]
        %v556 = vld [vmem:[%s426 + $0x148] sm:$0xff]
        %v557 = vld [vmem:[%s426 + $0x150] sm:$0xff]
        %v558 = vld [vmem:[%s426 + $0x158] sm:$0xff]
        %v559 = vld [vmem:[%s426 + $0x160] sm:$0xff]
        %v560 = vld [vmem:[%s426 + $0x168] sm:$0xff]
        %v561 = vld [vmem:[%s426 + $0x170] sm:$0xff]
        %v562 = vld [vmem:[%s426 + $0x178] sm:$0xff]
        %v563 = vld [vmem:[%s426 + $0x180] sm:$0xff]
        %v564 = vld [vmem:[%s426 + $0x188] sm:$0xff]
        %v565 = vld [vmem:[%s426 + $0x190] sm:$0xff]
        %v566 = vld [vmem:[%s426 + $0x198] sm:$0xff]
        %v567 = vld [vmem:[%s426 + $0x1a0] sm:$0xff]
        %v568 = vld [vmem:[%s426 + $0x1a8] sm:$0xff]
        %v569 = vld [vmem:[%s426 + $0x1b0] sm:$0xff]
        %v570 = vld [vmem:[%s426 + $0x1b8] sm:$0xff]
        %v571 = vld [vmem:[%s426 + $0x1c0] sm:$0xff]
        %v572 = vld [vmem:[%s426 + $0x1c8] sm:$0xff]
        %v573 = vld [vmem:[%s426 + $0x1d0] sm:$0xff]
        %v574 = vld [vmem:[%s426 + $0x1d8] sm:$0xff]
        %v575 = vld [vmem:[%s426 + $0x1e0] sm:$0xff]
        %v576 = vld [vmem:[%s426 + $0x1e8] sm:$0xff]
        %v577 = vld [vmem:[%s426 + $0x1f0] sm:$0xff]
        %v578 = vld [vmem:[%s426 + $0x1f8] sm:$0xff]
        %v579 = vld [vmem:[%s426 + $0x200] sm:$0xff]
        %v580 = vld [vmem:[%s426 + $0x208] sm:$0xff]
        %v581 = vld [vmem:[%s426 + $0x210] sm:$0xff]
        %v582 = vld [vmem:[%s426 + $0x218] sm:$0xff]
        %v583 = vld [vmem:[%s426 + $0x220] sm:$0xff]
        %v584 = vld [vmem:[%s426 + $0x228] sm:$0xff]
        %v585 = vld [vmem:[%s426 + $0x230] sm:$0xff]
        %v586 = vld [vmem:[%s426 + $0x238] sm:$0xff]
        %v587 = vld [vmem:[%s426 + $0x240] sm:$0xff]
        %v588 = vld [vmem:[%s426 + $0x248] sm:$0xff]
        %v589 = vld [vmem:[%s426 + $0x250] sm:$0xff]
        %v590 = vld [vmem:[%s426 + $0x258] sm:$0xff]
        %v591 = vld [vmem:[%s426 + $0x260] sm:$0xff]
        %v592 = vld [vmem:[%s426 + $0x268] sm:$0xff]
        %v593 = vld [vmem:[%s426 + $0x270] sm:$0xff]
        %v594 = vld [vmem:[%s426 + $0x278] sm:$0xff]
        %v595 = vld [vmem:[%s426 + $0x280] sm:$0xff]
        %v596 = vld [vmem:[%s426 + $0x288] sm:$0xff]
        %v597 = vld [vmem:[%s426 + $0x290] sm:$0xff]
        %v598 = vld [vmem:[%s426 + $0x298] sm:$0xff]
        %v599 = vld [vmem:[%s426 + $0x2a0] sm:$0xff]
        %v600 = vld [vmem:[%s426 + $0x2a8] sm:$0xff]
        %v601 = vld [vmem:[%s426 + $0x2b0] sm:$0xff]
        %v602 = vld [vmem:[%s426 + $0x2b8] sm:$0xff]
        %v603 = vld [vmem:[%s426 + $0x2c0] sm:$0xff]
        %v604 = vld [vmem:[%s426 + $0x2c8] sm:$0xff]
        %v605 = vld [vmem:[%s426 + $0x2d0] sm:$0xff]
        %v606 = vld [vmem:[%s426 + $0x2d8] sm:$0xff]
        %v607 = vld [vmem:[%s426 + $0x2e0] sm:$0xff]
        %v608 = vld [vmem:[%s426 + $0x2e8] sm:$0xff]
        %v609 = vld [vmem:[%s426 + $0x2f0] sm:$0xff]
        %v610 = vld [vmem:[%s426 + $0x2f8] sm:$0xff]
        %611 = vmatprep.subr.mxu0 %v546
        %612 = vmatpush1.msra.mxu0 %v545
        %613 = vmatprep.subr.mxu0 %v544
        %614 = vmatpush1.msra.mxu0 %v543
        %615 = vmatprep.subr.mxu0 %v542
        %616 = vmatpush1.msra.mxu0 %v541
        %617 = vmatprep.subr.mxu0 %v540
        %618 = vmatpush1.msra.mxu0 %v539
        %619 = vmatprep.subr.mxu0 %v538
        %620 = vmatpush1.msra.mxu0 %v537
        %621 = vmatprep.subr.mxu0 %v536
        %622 = vmatpush1.msra.mxu0 %v535
        %623 = vmatprep.subr.mxu0 %v534
        %624 = vmatpush1.msra.mxu0 %v533
        %625 = vmatprep.subr.mxu0 %v532
        %626 = vmatpush1.msra.mxu0 %v531
        %627 = vmatprep.subr.mxu0 %v530
        %628 = vmatpush1.msra.mxu0 %v529
        %629 = vmatprep.subr.mxu0 %v528
        %630 = vmatpush1.msra.mxu0 %v527
        %631 = vmatprep.subr.mxu0 %v526
        %632 = vmatpush1.msra.mxu0 %v525
        %633 = vmatprep.subr.mxu0 %v524
        %634 = vmatpush1.msra.mxu0 %v523
        %635 = vmatprep.subr.mxu0 %v522
        %636 = vmatpush1.msra.mxu0 %v521
        %637 = vmatprep.subr.mxu0 %v520
        %638 = vmatpush1.msra.mxu0 %v519
        %639 = vmatprep.subr.mxu0 %v518
        %640 = vmatpush1.msra.mxu0 %v517
        %641 = vmatprep.subr.mxu0 %v516
        %642 = vmatpush1.msra.mxu0 %v515
        %643 = vmatprep.subr.mxu0 %v578
        %644 = vmatpush2.msra.mxu0 %v577
        %645 = vmatprep.subr.mxu0 %v576
        %646 = vmatpush2.msra.mxu0 %v575
        %647 = vmatprep.subr.mxu0 %v574
        %648 = vmatpush2.msra.mxu0 %v573
        %649 = vmatprep.subr.mxu0 %v572
        %650 = vmatpush2.msra.mxu0 %v571
        %651 = vmatprep.subr.mxu0 %v570
        %652 = vmatpush2.msra.mxu0 %v569
        %653 = vmatprep.subr.mxu0 %v568
        %654 = vmatpush2.msra.mxu0 %v567
        %655 = vmatprep.subr.mxu0 %v566
        %656 = vmatpush2.msra.mxu0 %v565
        %657 = vmatprep.subr.mxu0 %v564
        %658 = vmatpush2.msra.mxu0 %v563
        %659 = vmatprep.subr.mxu0 %v562
        %660 = vmatpush2.msra.mxu0 %v561
        %661 = vmatprep.subr.mxu0 %v560
        %662 = vmatpush2.msra.mxu0 %v559
        %663 = vmatprep.subr.mxu0 %v558
        %664 = vmatpush2.msra.mxu0 %v557
        %665 = vmatprep.subr.mxu0 %v556
        %666 = vmatpush2.msra.mxu0 %v555
        %667 = vmatprep.subr.mxu0 %v554
        %668 = vmatpush2.msra.mxu0 %v553
        %669 = vmatprep.subr.mxu0 %v552
        %670 = vmatpush2.msra.mxu0 %v551
        %671 = vmatprep.subr.mxu0 %v550
        %672 = vmatpush2.msra.mxu0 %v549
        %673 = vmatprep.subr.mxu0 %v548
        %674 = vmatpush2.msra.mxu0 %v547
        %675 = vmatprep.mubr.f32.mxu0 %v468
        %676 = vmatmul.mubr.f32.gmra.mxu0 %v467
        %v677 = vpop.f32.mrf.mxu0
        %v678 = vadd.f32 0.0, %v677
        %v679 = vpop.f32.mrf.mxu0
        %v680 = vadd.f32 0.0, %v679
        %681 = vmatprep.mubr.f32.mxu0 %v471
        %682 = vmatmul.mubr.f32.gmra.mxu0 %v470
        %v683 = vpop.f32.mrf.mxu0
        %v684 = vadd.f32 0.0, %v683
        %v685 = vpop.f32.mrf.mxu0
        %v686 = vadd.f32 0.0, %v685
        %687 = vmatprep.mubr.f32.mxu0 %v474
        %688 = vmatmul.mubr.f32.gmra.mxu0 %v473
        %v689 = vpop.f32.mrf.mxu0
        %v690 = vadd.f32 0.0, %v689
        %v691 = vpop.f32.mrf.mxu0
        %v692 = vadd.f32 0.0, %v691
        %693 = vmatprep.mubr.f32.mxu0 %v477
        %694 = vmatmul.mubr.f32.gmra.mxu0 %v476
        %v695 = vpop.f32.mrf.mxu0
        %v696 = vadd.f32 0.0, %v695
        %v697 = vpop.f32.mrf.mxu0
        %v698 = vadd.f32 0.0, %v697
        %699 = vmatprep.mubr.f32.mxu0 %v480
        %700 = vmatmul.mubr.f32.gmra.mxu0 %v479
        %v701 = vpop.f32.mrf.mxu0
        %v702 = vadd.f32 0.0, %v701
        %v703 = vpop.f32.mrf.mxu0
        %v704 = vadd.f32 0.0, %v703
        %705 = vmatprep.mubr.f32.mxu0 %v483
        %706 = vmatmul.mubr.f32.gmra.mxu0 %v482
        %v707 = vpop.f32.mrf.mxu0
        %v708 = vadd.f32 0.0, %v707
        %v709 = vpop.f32.mrf.mxu0
        %v710 = vadd.f32 0.0, %v709
        %711 = vmatprep.mubr.f32.mxu0 %v486
        %712 = vmatmul.mubr.f32.gmra.mxu0 %v485
        %v713 = vpop.f32.mrf.mxu0
        %v714 = vadd.f32 0.0, %v713
        %v715 = vpop.f32.mrf.mxu0
        %v716 = vadd.f32 0.0, %v715
        %717 = vmatprep.mubr.f32.mxu0 %v489
        %718 = vmatmul.mubr.f32.gmra.mxu0 %v488
        %v719 = vpop.f32.mrf.mxu0
        %v720 = vadd.f32 0.0, %v719
        %v721 = vpop.f32.mrf.mxu0
        %v722 = vadd.f32 0.0, %v721
        %723 = vmatprep.mubr.f32.mxu0 %v492
        %724 = vmatmul.mubr.f32.gmra.mxu0 %v491
        %v725 = vpop.f32.mrf.mxu0
        %v726 = vadd.f32 0.0, %v725
        %v727 = vpop.f32.mrf.mxu0
        %v728 = vadd.f32 0.0, %v727
        %729 = vmatprep.mubr.f32.mxu0 %v495
        %730 = vmatmul.mubr.f32.gmra.mxu0 %v494
        %v731 = vpop.f32.mrf.mxu0
        %v732 = vadd.f32 0.0, %v731
        %v733 = vpop.f32.mrf.mxu0
        %v734 = vadd.f32 0.0, %v733
        %735 = vmatprep.mubr.f32.mxu0 %v498
        %736 = vmatmul.mubr.f32.gmra.mxu0 %v497
        %v737 = vpop.f32.mrf.mxu0
        %v738 = vadd.f32 0.0, %v737
        %v739 = vpop.f32.mrf.mxu0
        %v740 = vadd.f32 0.0, %v739
        %741 = vmatprep.mubr.f32.mxu0 %v501
        %742 = vmatmul.mubr.f32.gmra.mxu0 %v500
        %v743 = vpop.f32.mrf.mxu0
        %v744 = vadd.f32 0.0, %v743
        %v745 = vpop.f32.mrf.mxu0
        %v746 = vadd.f32 0.0, %v745
        %747 = vmatprep.mubr.f32.mxu0 %v504
        %748 = vmatmul.mubr.f32.gmra.mxu0 %v503
        %v749 = vpop.f32.mrf.mxu0
        %v750 = vadd.f32 0.0, %v749
        %v751 = vpop.f32.mrf.mxu0
        %v752 = vadd.f32 0.0, %v751
        %753 = vmatprep.mubr.f32.mxu0 %v507
        %754 = vmatmul.mubr.f32.gmra.mxu0 %v506
        %v755 = vpop.f32.mrf.mxu0
        %v756 = vadd.f32 0.0, %v755
        %v757 = vpop.f32.mrf.mxu0
        %v758 = vadd.f32 0.0, %v757
        %759 = vmatprep.mubr.f32.mxu0 %v510
        %760 = vmatmul.mubr.f32.gmra.mxu0 %v509
        %v761 = vpop.f32.mrf.mxu0
        %v762 = vadd.f32 0.0, %v761
        %v763 = vpop.f32.mrf.mxu0
        %v764 = vadd.f32 0.0, %v763
        %765 = vmatprep.mubr.f32.mxu0 %v513
        %766 = vmatmul.mubr.f32.gmra.mxu0 %v512
        %v767 = vpop.f32.mrf.mxu0
        %v768 = vadd.f32 0.0, %v767
        %v769 = vpop.f32.mrf.mxu0
        %v770 = vadd.f32 0.0, %v769
        %771 = vdwg.mxu0
        %772 = vmatprep.subr.mxu0 %v610
        %773 = vmatpush1.msra.mxu0 %v609
        %774 = vmatprep.subr.mxu0 %v608
        %775 = vmatpush1.msra.mxu0 %v607
        %776 = vmatprep.subr.mxu0 %v606
        %777 = vmatpush1.msra.mxu0 %v605
        %778 = vmatprep.subr.mxu0 %v604
        %779 = vmatpush1.msra.mxu0 %v603
        %780 = vmatprep.subr.mxu0 %v602
        %781 = vmatpush1.msra.mxu0 %v601
        %782 = vmatprep.subr.mxu0 %v600
        %783 = vmatpush1.msra.mxu0 %v599
        %784 = vmatprep.subr.mxu0 %v598
        %785 = vmatpush1.msra.mxu0 %v597
        %786 = vmatprep.subr.mxu0 %v596
        %787 = vmatpush1.msra.mxu0 %v595
        %788 = vmatprep.subr.mxu0 %v594
        %789 = vmatpush1.msra.mxu0 %v593
        %790 = vmatprep.subr.mxu0 %v592
        %791 = vmatpush1.msra.mxu0 %v591
        %792 = vmatprep.subr.mxu0 %v590
        %793 = vmatpush1.msra.mxu0 %v589
        %794 = vmatprep.subr.mxu0 %v588
        %795 = vmatpush1.msra.mxu0 %v587
        %796 = vmatprep.subr.mxu0 %v586
        %797 = vmatpush1.msra.mxu0 %v585
        %798 = vmatprep.subr.mxu0 %v584
        %799 = vmatpush1.msra.mxu0 %v583
        %800 = vmatprep.subr.mxu0 %v582
        %801 = vmatpush1.msra.mxu0 %v581
        %802 = vmatprep.subr.mxu0 %v580
        %803 = vmatpush1.msra.mxu0 %v579
        %804 = vmatprep.subr.mxu0 0.0
        %805 = vmatpush2.msra.mxu0 0.0
        %806 = vmatprep.subr.mxu0 0.0
        %807 = vmatpush2.msra.mxu0 0.0
        %808 = vmatprep.subr.mxu0 0.0
        %809 = vmatpush2.msra.mxu0 0.0
        %810 = vmatprep.subr.mxu0 0.0
        %811 = vmatpush2.msra.mxu0 0.0
        %812 = vmatprep.subr.mxu0 0.0
        %813 = vmatpush2.msra.mxu0 0.0
        %814 = vmatprep.subr.mxu0 0.0
        %815 = vmatpush2.msra.mxu0 0.0
        %816 = vmatprep.subr.mxu0 0.0
        %817 = vmatpush2.msra.mxu0 0.0
        %818 = vmatprep.subr.mxu0 0.0
        %819 = vmatpush2.msra.mxu0 0.0
        %820 = vmatprep.subr.mxu0 0.0
        %821 = vmatpush2.msra.mxu0 0.0
        %822 = vmatprep.subr.mxu0 0.0
        %823 = vmatpush2.msra.mxu0 0.0
        %824 = vmatprep.subr.mxu0 0.0
        %825 = vmatpush2.msra.mxu0 0.0
        %826 = vmatprep.subr.mxu0 0.0
        %827 = vmatpush2.msra.mxu0 0.0
        %828 = vmatprep.subr.mxu0 0.0
        %829 = vmatpush2.msra.mxu0 0.0
        %830 = vmatprep.subr.mxu0 0.0
        %831 = vmatpush2.msra.mxu0 0.0
        %832 = vmatprep.subr.mxu0 0.0
        %833 = vmatpush2.msra.mxu0 0.0
        %834 = vmatprep.subr.mxu0 0.0
        %835 = vmatpush2.msra.mxu0 0.0
        %836 = vmatprep.mubr.f32.mxu0 0.0
        %837 = vmatmul.mubr.f32.gmra.mxu0 %v469
        %v838 = vpop.f32.mrf.mxu0
        %v839 = vadd.f32 %v678, %v838
        %v840 = vpop.f32.mrf.mxu0
        %v841 = vadd.f32 %v680, %v840
        %842 = vmatprep.mubr.f32.mxu0 0.0
        %843 = vmatmul.mubr.f32.gmra.mxu0 %v472
        %v844 = vpop.f32.mrf.mxu0
        %v845 = vadd.f32 %v684, %v844
        %v846 = vpop.f32.mrf.mxu0
        %v847 = vadd.f32 %v686, %v846
        %848 = vmatprep.mubr.f32.mxu0 0.0
        %849 = vmatmul.mubr.f32.gmra.mxu0 %v475
        %v850 = vpop.f32.mrf.mxu0
        %v851 = vadd.f32 %v690, %v850
        %v852 = vpop.f32.mrf.mxu0
        %v853 = vadd.f32 %v692, %v852
        %854 = vmatprep.mubr.f32.mxu0 0.0
        %855 = vmatmul.mubr.f32.gmra.mxu0 %v478
        %v856 = vpop.f32.mrf.mxu0
        %v857 = vadd.f32 %v696, %v856
        %v858 = vpop.f32.mrf.mxu0
        %v859 = vadd.f32 %v698, %v858
        %860 = vmatprep.mubr.f32.mxu0 0.0
        %861 = vmatmul.mubr.f32.gmra.mxu0 %v481
        %v862 = vpop.f32.mrf.mxu0
        %v863 = vadd.f32 %v702, %v862
        %v864 = vpop.f32.mrf.mxu0
        %v865 = vadd.f32 %v704, %v864
        %866 = vmatprep.mubr.f32.mxu0 0.0
        %867 = vmatmul.mubr.f32.gmra.mxu0 %v484
        %v868 = vpop.f32.mrf.mxu0
        %v869 = vadd.f32 %v708, %v868
        %v870 = vpop.f32.mrf.mxu0
        %v871 = vadd.f32 %v710, %v870
        %872 = vmatprep.mubr.f32.mxu0 0.0
        %873 = vmatmul.mubr.f32.gmra.mxu0 %v487
        %v874 = vpop.f32.mrf.mxu0
        %v875 = vadd.f32 %v714, %v874
        %v876 = vpop.f32.mrf.mxu0
        %v877 = vadd.f32 %v716, %v876
        %878 = vmatprep.mubr.f32.mxu0 0.0
        %879 = vmatmul.mubr.f32.gmra.mxu0 %v490
        %v880 = vpop.f32.mrf.mxu0
        %v881 = vadd.f32 %v720, %v880
        %v882 = vpop.f32.mrf.mxu0
        %v883 = vadd.f32 %v722, %v882
        %884 = vmatprep.mubr.f32.mxu0 0.0
        %885 = vmatmul.mubr.f32.gmra.mxu0 %v493
        %v886 = vpop.f32.mrf.mxu0
        %v887 = vadd.f32 %v726, %v886
        %v888 = vpop.f32.mrf.mxu0
        %v889 = vadd.f32 %v728, %v888
        %890 = vmatprep.mubr.f32.mxu0 0.0
        %891 = vmatmul.mubr.f32.gmra.mxu0 %v496
        %v892 = vpop.f32.mrf.mxu0
        %v893 = vadd.f32 %v732, %v892
        %v894 = vpop.f32.mrf.mxu0
        %v895 = vadd.f32 %v734, %v894
        %896 = vmatprep.mubr.f32.mxu0 0.0
        %897 = vmatmul.mubr.f32.gmra.mxu0 %v499
        %v898 = vpop.f32.mrf.mxu0
        %v899 = vadd.f32 %v738, %v898
        %v900 = vpop.f32.mrf.mxu0
        %v901 = vadd.f32 %v740, %v900
        %902 = vmatprep.mubr.f32.mxu0 0.0
        %903 = vmatmul.mubr.f32.gmra.mxu0 %v502
        %v904 = vpop.f32.mrf.mxu0
        %v905 = vadd.f32 %v744, %v904
        %v906 = vpop.f32.mrf.mxu0
        %v907 = vadd.f32 %v746, %v906
        %908 = vmatprep.mubr.f32.mxu0 0.0
        %909 = vmatmul.mubr.f32.gmra.mxu0 %v505
        %v910 = vpop.f32.mrf.mxu0
        %v911 = vadd.f32 %v750, %v910
        %v912 = vpop.f32.mrf.mxu0
        %v913 = vadd.f32 %v752, %v912
        %914 = vmatprep.mubr.f32.mxu0 0.0
        %915 = vmatmul.mubr.f32.gmra.mxu0 %v508
        %v916 = vpop.f32.mrf.mxu0
        %v917 = vadd.f32 %v756, %v916
        %v918 = vpop.f32.mrf.mxu0
        %v919 = vadd.f32 %v758, %v918
        %920 = vmatprep.mubr.f32.mxu0 0.0
        %921 = vmatmul.mubr.f32.gmra.mxu0 %v511
        %v922 = vpop.f32.mrf.mxu0
        %v923 = vadd.f32 %v762, %v922
        %v924 = vpop.f32.mrf.mxu0
        %v925 = vadd.f32 %v764, %v924
        %926 = vmatprep.mubr.f32.mxu0 0.0
        %927 = vmatmul.mubr.f32.gmra.mxu0 %v514
        %v928 = vpop.f32.mrf.mxu0
        %v929 = vadd.f32 %v768, %v928
        %v930 = vpop.f32.mrf.mxu0
        %v931 = vadd.f32 %v770, %v930
        %932 = vdwg.mxu0
        %933 = vst [vmem:[#allocation2] sm:$0xff] %v839
        %934 = vst [vmem:[#allocation2 + $0x8] sm:$0xff] %v841
        %935 = vst [vmem:[#allocation2 + $0x10] sm:$0xff] %v845
        %936 = vst [vmem:[#allocation2 + $0x18] sm:$0xff] %v847
        %937 = vst [vmem:[#allocation2 + $0x20] sm:$0xff] %v851
        %938 = vst [vmem:[#allocation2 + $0x28] sm:$0xff] %v853
        %939 = vst [vmem:[#allocation2 + $0x30] sm:$0xff] %v857
        %940 = vst [vmem:[#allocation2 + $0x38] sm:$0xff] %v859
        %941 = vst [vmem:[#allocation2 + $0x40] sm:$0xff] %v863
        %942 = vst [vmem:[#allocation2 + $0x48] sm:$0xff] %v865
        %943 = vst [vmem:[#allocation2 + $0x50] sm:$0xff] %v869
        %944 = vst [vmem:[#allocation2 + $0x58] sm:$0xff] %v871
        %945 = vst [vmem:[#allocation2 + $0x60] sm:$0xff] %v875
        %946 = vst [vmem:[#allocation2 + $0x68] sm:$0xff] %v877
        %947 = vst [vmem:[#allocation2 + $0x70] sm:$0xff] %v881
        %948 = vst [vmem:[#allocation2 + $0x78] sm:$0xff] %v883
        %949 = vst [vmem:[#allocation2 + $0x80] sm:$0xff] %v887
        %950 = vst [vmem:[#allocation2 + $0x88] sm:$0xff] %v889
        %951 = vst [vmem:[#allocation2 + $0x90] sm:$0xff] %v893
        %952 = vst [vmem:[#allocation2 + $0x98] sm:$0xff] %v895
        %953 = vst [vmem:[#allocation2 + $0xa0] sm:$0xff] %v899
        %954 = vst [vmem:[#allocation2 + $0xa8] sm:$0xff] %v901
        %955 = vst [vmem:[#allocation2 + $0xb0] sm:$0xff] %v905
        %956 = vst [vmem:[#allocation2 + $0xb8] sm:$0xff] %v907
        %957 = vst [vmem:[#allocation2 + $0xc0] sm:$0xff] %v911
        %958 = vst [vmem:[#allocation2 + $0xc8] sm:$0xff] %v913
        %959 = vst [vmem:[#allocation2 + $0xd0] sm:$0xff] %v917
        %960 = vst [vmem:[#allocation2 + $0xd8] sm:$0xff] %v919
        %961 = vst [vmem:[#allocation2 + $0xe0] sm:$0xff] %v923
        %962 = vst [vmem:[#allocation2 + $0xe8] sm:$0xff] %v925
        %963 = vst [vmem:[#allocation2 + $0xf0] sm:$0xff] %v929
        %964 = vst [vmem:[#allocation2 + $0xf8] sm:$0xff] %v931
        %v965 = vld [vmem:[#allocation2] sm:$0xff]
        %v966 = vld [vmem:[#allocation2 + $0x8] sm:$0xff]
        %v967 = vld [vmem:[#allocation2 + $0x10] sm:$0xff]
        %v968 = vld [vmem:[#allocation2 + $0x18] sm:$0xff]
        %v969 = vld [vmem:[#allocation2 + $0x20] sm:$0xff]
        %v970 = vld [vmem:[#allocation2 + $0x28] sm:$0xff]
        %v971 = vld [vmem:[#allocation2 + $0x30] sm:$0xff]
        %v972 = vld [vmem:[#allocation2 + $0x38] sm:$0xff]
        %v973 = vxor.u32 %v965, 2147483648
        %v974 = vxor.u32 %v966, 2147483648
        %v975 = vxor.u32 %v967, 2147483648
        %v976 = vxor.u32 %v968, 2147483648
        %v977 = vxor.u32 %v969, 2147483648
        %v978 = vxor.u32 %v970, 2147483648
        %v979 = vxor.u32 %v971, 2147483648
        %v980 = vxor.u32 %v972, 2147483648
        %v981 = vmul.f32 %v973, 1.442695
        %v982 = vpow.pop %v981
        %v983 = vmul.f32 %v974, 1.442695
        %v984 = vpow.pop %v983
        %v985 = vmul.f32 %v975, 1.442695
        %v986 = vpow.pop %v985
        %v987 = vmul.f32 %v976, 1.442695
        %v988 = vpow.pop %v987
        %v989 = vmul.f32 %v977, 1.442695
        %v990 = vpow.pop %v989
        %v991 = vmul.f32 %v978, 1.442695
        %v992 = vpow.pop %v991
        %v993 = vmul.f32 %v979, 1.442695
        %v994 = vpow.pop %v993
        %v995 = vmul.f32 %v980, 1.442695
        %v996 = vpow.pop %v995
        %v997 = vadd.f32 %v982, 1.0
        %v998 = vadd.f32 %v984, 1.0
        %v999 = vadd.f32 %v986, 1.0
        %v1000 = vadd.f32 %v988, 1.0
        %v1001 = vadd.f32 %v990, 1.0
        %v1002 = vadd.f32 %v992, 1.0
        %v1003 = vadd.f32 %v994, 1.0
        %v1004 = vadd.f32 %v996, 1.0
        %v1005 = vrcp.pop %v997
        %v1006 = vmul.f32 1.0, %v1005
        %v1007 = vrcp.pop %v998
        %v1008 = vmul.f32 1.0, %v1007
        %v1009 = vrcp.pop %v999
        %v1010 = vmul.f32 1.0, %v1009
        %v1011 = vrcp.pop %v1000
        %v1012 = vmul.f32 1.0, %v1011
        %v1013 = vrcp.pop %v1001
        %v1014 = vmul.f32 1.0, %v1013
        %v1015 = vrcp.pop %v1002
        %v1016 = vmul.f32 1.0, %v1015
        %v1017 = vrcp.pop %v1003
        %v1018 = vmul.f32 1.0, %v1017
        %v1019 = vrcp.pop %v1004
        %v1020 = vmul.f32 1.0, %v1019
        %v1021 = vld [vmem:[#allocation2 + $0x40] sm:$0xff]
        %v1022 = vld [vmem:[#allocation2 + $0x48] sm:$0xff]
        %v1023 = vld [vmem:[#allocation2 + $0x50] sm:$0xff]
        %v1024 = vld [vmem:[#allocation2 + $0x58] sm:$0xff]
        %v1025 = vld [vmem:[#allocation2 + $0x60] sm:$0xff]
        %v1026 = vld [vmem:[#allocation2 + $0x68] sm:$0xff]
        %v1027 = vld [vmem:[#allocation2 + $0x70] sm:$0xff]
        %v1028 = vld [vmem:[#allocation2 + $0x78] sm:$0xff]
        %v1029 = vxor.u32 %v1021, 2147483648
        %v1030 = vxor.u32 %v1022, 2147483648
        %v1031 = vxor.u32 %v1023, 2147483648
        %v1032 = vxor.u32 %v1024, 2147483648
        %v1033 = vxor.u32 %v1025, 2147483648
        %v1034 = vxor.u32 %v1026, 2147483648
        %v1035 = vxor.u32 %v1027, 2147483648
        %v1036 = vxor.u32 %v1028, 2147483648
        %v1037 = vmul.f32 %v1029, 1.442695
        %v1038 = vpow.pop %v1037
        %v1039 = vmul.f32 %v1030, 1.442695
        %v1040 = vpow.pop %v1039
        %v1041 = vmul.f32 %v1031, 1.442695
        %v1042 = vpow.pop %v1041
        %v1043 = vmul.f32 %v1032, 1.442695
        %v1044 = vpow.pop %v1043
        %v1045 = vmul.f32 %v1033, 1.442695
        %v1046 = vpow.pop %v1045
        %v1047 = vmul.f32 %v1034, 1.442695
        %v1048 = vpow.pop %v1047
        %v1049 = vmul.f32 %v1035, 1.442695
        %v1050 = vpow.pop %v1049
        %v1051 = vmul.f32 %v1036, 1.442695
        %v1052 = vpow.pop %v1051
        %v1053 = vadd.f32 %v1038, 1.0
        %v1054 = vadd.f32 %v1040, 1.0
        %v1055 = vadd.f32 %v1042, 1.0
        %v1056 = vadd.f32 %v1044, 1.0
        %v1057 = vadd.f32 %v1046, 1.0
        %v1058 = vadd.f32 %v1048, 1.0
        %v1059 = vadd.f32 %v1050, 1.0
        %v1060 = vadd.f32 %v1052, 1.0
        %v1061 = vrcp.pop %v1053
        %v1062 = vmul.f32 1.0, %v1061
        %v1063 = vrcp.pop %v1054
        %v1064 = vmul.f32 1.0, %v1063
        %v1065 = vrcp.pop %v1055
        %v1066 = vmul.f32 1.0, %v1065
        %v1067 = vrcp.pop %v1056
        %v1068 = vmul.f32 1.0, %v1067
        %v1069 = vrcp.pop %v1057
        %v1070 = vmul.f32 1.0, %v1069
        %v1071 = vrcp.pop %v1058
        %v1072 = vmul.f32 1.0, %v1071
        %v1073 = vrcp.pop %v1059
        %v1074 = vmul.f32 1.0, %v1073
        %v1075 = vrcp.pop %v1060
        %v1076 = vmul.f32 1.0, %v1075
        %v1077 = vld [vmem:[#allocation2 + $0x80] sm:$0xff]
        %v1078 = vld [vmem:[#allocation2 + $0x88] sm:$0xff]
        %v1079 = vld [vmem:[#allocation2 + $0x90] sm:$0xff]
        %v1080 = vld [vmem:[#allocation2 + $0x98] sm:$0xff]
        %v1081 = vld [vmem:[#allocation2 + $0xa0] sm:$0xff]
        %v1082 = vld [vmem:[#allocation2 + $0xa8] sm:$0xff]
        %v1083 = vld [vmem:[#allocation2 + $0xb0] sm:$0xff]
        %v1084 = vld [vmem:[#allocation2 + $0xb8] sm:$0xff]
        %v1085 = vxor.u32 %v1077, 2147483648
        %v1086 = vxor.u32 %v1078, 2147483648
        %v1087 = vxor.u32 %v1079, 2147483648
        %v1088 = vxor.u32 %v1080, 2147483648
        %v1089 = vxor.u32 %v1081, 2147483648
        %v1090 = vxor.u32 %v1082, 2147483648
        %v1091 = vxor.u32 %v1083, 2147483648
        %v1092 = vxor.u32 %v1084, 2147483648
        %v1093 = vmul.f32 %v1085, 1.442695
        %v1094 = vpow.pop %v1093
        %v1095 = vmul.f32 %v1086, 1.442695
        %v1096 = vpow.pop %v1095
        %v1097 = vmul.f32 %v1087, 1.442695
        %v1098 = vpow.pop %v1097
        %v1099 = vmul.f32 %v1088, 1.442695
        %v1100 = vpow.pop %v1099
        %v1101 = vmul.f32 %v1089, 1.442695
        %v1102 = vpow.pop %v1101
        %v1103 = vmul.f32 %v1090, 1.442695
        %v1104 = vpow.pop %v1103
        %v1105 = vmul.f32 %v1091, 1.442695
        %v1106 = vpow.pop %v1105
        %v1107 = vmul.f32 %v1092, 1.442695
        %v1108 = vpow.pop %v1107
        %v1109 = vadd.f32 %v1094, 1.0
        %v1110 = vadd.f32 %v1096, 1.0
        %v1111 = vadd.f32 %v1098, 1.0
        %v1112 = vadd.f32 %v1100, 1.0
        %v1113 = vadd.f32 %v1102, 1.0
        %v1114 = vadd.f32 %v1104, 1.0
        %v1115 = vadd.f32 %v1106, 1.0
        %v1116 = vadd.f32 %v1108, 1.0
        %v1117 = vrcp.pop %v1109
        %v1118 = vmul.f32 1.0, %v1117
        %v1119 = vrcp.pop %v1110
        %v1120 = vmul.f32 1.0, %v1119
        %v1121 = vrcp.pop %v1111
        %v1122 = vmul.f32 1.0, %v1121
        %v1123 = vrcp.pop %v1112
        %v1124 = vmul.f32 1.0, %v1123
        %v1125 = vrcp.pop %v1113
        %v1126 = vmul.f32 1.0, %v1125
        %v1127 = vrcp.pop %v1114
        %v1128 = vmul.f32 1.0, %v1127
        %v1129 = vrcp.pop %v1115
        %v1130 = vmul.f32 1.0, %v1129
        %v1131 = vrcp.pop %v1116
        %v1132 = vmul.f32 1.0, %v1131
        %v1133 = vld [vmem:[#allocation2 + $0xc0] sm:$0xff]
        %v1134 = vld [vmem:[#allocation2 + $0xc8] sm:$0xff]
        %v1135 = vld [vmem:[#allocation2 + $0xd0] sm:$0xff]
        %v1136 = vld [vmem:[#allocation2 + $0xd8] sm:$0xff]
        %v1137 = vld [vmem:[#allocation2 + $0xe0] sm:$0xff]
        %v1138 = vld [vmem:[#allocation2 + $0xe8] sm:$0xff]
        %v1139 = vld [vmem:[#allocation2 + $0xf0] sm:$0xff]
        %v1140 = vld [vmem:[#allocation2 + $0xf8] sm:$0xff]
        %v1141 = vtanh.pop %v1133
        %v1142 = vtanh.pop %v1134
        %v1143 = vtanh.pop %v1135
        %v1144 = vtanh.pop %v1136
        %v1145 = vtanh.pop %v1137
        %v1146 = vtanh.pop %v1138
        %v1147 = vtanh.pop %v1139
        %v1148 = vtanh.pop %v1140
        %v1149 = vld [vmem:[%s433] sm:$0xff]
        %v1150 = vld [vmem:[%s433 + $0x8] sm:$0xff]
        %v1151 = vld [vmem:[%s433 + $0x10] sm:$0xff]
        %v1152 = vld [vmem:[%s433 + $0x18] sm:$0xff]
        %v1153 = vld [vmem:[%s433 + $0x20] sm:$0xff]
        %v1154 = vld [vmem:[%s433 + $0x28] sm:$0xff]
        %v1155 = vld [vmem:[%s433 + $0x30] sm:$0xff]
        %v1156 = vld [vmem:[%s433 + $0x38] sm:$0xff]
        %v1157 = vmul.f32 %v1062, %v1149
        %v1158 = vmul.f32 %v1064, %v1150
        %v1159 = vmul.f32 %v1066, %v1151
        %v1160 = vmul.f32 %v1068, %v1152
        %v1161 = vmul.f32 %v1070, %v1153
        %v1162 = vmul.f32 %v1072, %v1154
        %v1163 = vmul.f32 %v1074, %v1155
        %v1164 = vmul.f32 %v1076, %v1156
        %v1165 = vmul.f32 %v1006, %v1141
        %v1166 = vmul.f32 %v1008, %v1142
        %v1167 = vmul.f32 %v1010, %v1143
        %v1168 = vmul.f32 %v1012, %v1144
        %v1169 = vmul.f32 %v1014, %v1145
        %v1170 = vmul.f32 %v1016, %v1146
        %v1171 = vmul.f32 %v1018, %v1147
        %v1172 = vmul.f32 %v1020, %v1148
        %v1173 = vadd.f32 %v1157, %v1165
        %v1174 = vadd.f32 %v1158, %v1166
        %v1175 = vadd.f32 %v1159, %v1167
        %v1176 = vadd.f32 %v1160, %v1168
        %v1177 = vadd.f32 %v1161, %v1169
        %v1178 = vadd.f32 %v1162, %v1170
        %v1179 = vadd.f32 %v1163, %v1171
        %v1180 = vadd.f32 %v1164, %v1172
        %1181 = vst [vmem:[%s462] sm:$0xff] %v1173
        %1182 = vst [vmem:[%s462 + $0x8] sm:$0xff] %v1174
        %1183 = vst [vmem:[%s462 + $0x10] sm:$0xff] %v1175
        %1184 = vst [vmem:[%s462 + $0x18] sm:$0xff] %v1176
        %1185 = vst [vmem:[%s462 + $0x20] sm:$0xff] %v1177
        %1186 = vst [vmem:[%s462 + $0x28] sm:$0xff] %v1178
        %1187 = vst [vmem:[%s462 + $0x30] sm:$0xff] %v1179
        %1188 = vst [vmem:[%s462 + $0x38] sm:$0xff] %v1180
        %v1189 = vtanh.pop %v1173
        %v1190 = vtanh.pop %v1174
        %v1191 = vtanh.pop %v1175
        %v1192 = vtanh.pop %v1176
        %v1193 = vtanh.pop %v1177
        %v1194 = vtanh.pop %v1178
        %v1195 = vtanh.pop %v1179
        %v1196 = vtanh.pop %v1180
        %v1197 = vmul.f32 %v1118, %v1189
        %v1198 = vmul.f32 %v1120, %v1190
        %v1199 = vmul.f32 %v1122, %v1191
        %v1200 = vmul.f32 %v1124, %v1192
        %v1201 = vmul.f32 %v1126, %v1193
        %v1202 = vmul.f32 %v1128, %v1194
        %v1203 = vmul.f32 %v1130, %v1195
        %v1204 = vmul.f32 %v1132, %v1196
        %1205 = vst [vmem:[%s456] sm:$0xff] %v1197
        %1206 = vst [vmem:[%s456 + $0x8] sm:$0xff] %v1198
        %1207 = vst [vmem:[%s456 + $0x10] sm:$0xff] %v1199
        %1208 = vst [vmem:[%s456 + $0x18] sm:$0xff] %v1200
        %1209 = vst [vmem:[%s456 + $0x20] sm:$0xff] %v1201
        %1210 = vst [vmem:[%s456 + $0x28] sm:$0xff] %v1202
        %1211 = vst [vmem:[%s456 + $0x30] sm:$0xff] %v1203
        %1212 = vst [vmem:[%s456 + $0x38] sm:$0xff] %v1204
        %s1213 = sand.u32 %s97, 1
        %s1214 = sand.u32 %s97, 1
        %s1215 = smul.addr %s1214, 64
        %s1216 = scalar_lea.vmem [#allocation5], %s1215
        %s1217 = sand.u32 %s123, 1
        %s1218 = sand.u32 %s123, 1
        %s1219 = smul.addr %s1218, 64
        %s1220 = scalar_lea.vmem [#allocation6], %s1219
        // Predicated region
        $region79: #{convlstm_cell_pallas.1} parent=69 // pred_check
          %p1221 = pneg %p107
        $region80: #{convlstm_cell_pallas.1} parent=69 // pred_check_branch
          %1223 = sbr.rel (%p1221) target = $region82
        $region81: #{convlstm_cell_pallas.1} parent=69 // pred_region
          %s1224 = smul.u32 2, %s16
          %s1225 = smul.addr %s1224, 8
          %s1226 = scalar_lea.vmem %s3, %s1225
          // Predicated region
          $region83: #{convlstm_cell_pallas.1} parent=81 // pred_check
            _
          $region84: #{convlstm_cell_pallas.1} parent=81 // pred_check_branch
            %1228 = sbr.rel (0) target = $region86
          $region85: #{convlstm_cell_pallas.1} parent=81 // pred_region
            // Predicated region
            $region87: #{convlstm_cell_pallas.1} parent=85 // pred_check
              _
            $region88: #{convlstm_cell_pallas.1} parent=85 // pred_check_branch
              %1230 = sbr.rel (0) target = $region90
            $region89: #{convlstm_cell_pallas.1} parent=85 // pred_region
              loop: start=0, step=1, limit=1
              $region91: #{convlstm_cell_pallas.1} parent=89 // loop_pre_header
                _
              $region92: #{convlstm_cell_pallas.1} parent=89 // loop_header
                %s1232 = sphi 0, %s1236
                %p1233 = scmp.ge.s32.totalorder %s1232, 1
                %s1237 = sphi %s1216, %s1216
                %s1238 = sphi %s1226, %s1226
              $region93: #{convlstm_cell_pallas.1} parent=89 // loop_header_branch
                %1235 = sbr.rel (%p1233) target = $region97
              $region94: #{convlstm_cell_pallas.1} parent=89 // loop_body
                %v1239 = vld [vmem:[%s1237] sm:$0xff]
                %1240 = vst [vmem:[%s1238] sm:$0xff] %v1239
                %v1241 = vld [vmem:[%s1237 + $0x8] sm:$0xff]
                %1242 = vst [vmem:[%s1238 + $0x8] sm:$0xff] %v1241
                %v1243 = vld [vmem:[%s1237 + $0x10] sm:$0xff]
                %1244 = vst [vmem:[%s1238 + $0x20] sm:$0xff] %v1243
                %v1245 = vld [vmem:[%s1237 + $0x18] sm:$0xff]
                %1246 = vst [vmem:[%s1238 + $0x28] sm:$0xff] %v1245
                %v1247 = vld [vmem:[%s1237 + $0x20] sm:$0xff]
                %1248 = vst [vmem:[%s1238 + $0x40] sm:$0xff] %v1247
                %v1249 = vld [vmem:[%s1237 + $0x28] sm:$0xff]
                %1250 = vst [vmem:[%s1238 + $0x48] sm:$0xff] %v1249
                %v1251 = vld [vmem:[%s1237 + $0x30] sm:$0xff]
                %1252 = vst [vmem:[%s1238 + $0x60] sm:$0xff] %v1251
                %v1253 = vld [vmem:[%s1237 + $0x38] sm:$0xff]
                %1254 = vst [vmem:[%s1238 + $0x68] sm:$0xff] %v1253
              $region95: #{convlstm_cell_pallas.1} parent=89 // loop_footer
                %s1236 = sadd.s32 1, %s1232
              $region96: #{convlstm_cell_pallas.1} parent=89 // loop_footer_branch
                %1231 = sbr.rel target = $region92
              $region97: #{convlstm_cell_pallas.1} parent=89 // loop_exit
                _
            $region90: #{convlstm_cell_pallas.1} parent=85 // pred_fallthru
              _
            // Predicated region
            $region98: #{convlstm_cell_pallas.1} parent=85 // pred_check
              _
            $region99: #{convlstm_cell_pallas.1} parent=85 // pred_check_branch
              %1256 = sbr.rel target = $region101
            $region100: #{convlstm_cell_pallas.1} parent=85 // pred_region
              _
            $region101: #{convlstm_cell_pallas.1} parent=85 // pred_fallthru
              _
          $region86: #{convlstm_cell_pallas.1} parent=81 // pred_fallthru
            _
          %1257 = vnop
        $region82: #{convlstm_cell_pallas.1} parent=69 // pred_fallthru
          _
        // Predicated region
        $region102: #{convlstm_cell_pallas.1} parent=69 // pred_check
          %p1258 = pneg %p133
        $region103: #{convlstm_cell_pallas.1} parent=69 // pred_check_branch
          %1260 = sbr.rel (%p1258) target = $region105
        $region104: #{convlstm_cell_pallas.1} parent=69 // pred_region
          %s1261 = smul.u32 2, %s16
          %s1262 = smul.addr %s1261, 8
          %s1263 = scalar_lea.vmem %s4, %s1262
          // Predicated region
          $region106: #{convlstm_cell_pallas.1} parent=104 // pred_check
            _
          $region107: #{convlstm_cell_pallas.1} parent=104 // pred_check_branch
            %1265 = sbr.rel (0) target = $region109
          $region108: #{convlstm_cell_pallas.1} parent=104 // pred_region
            // Predicated region
            $region110: #{convlstm_cell_pallas.1} parent=108 // pred_check
              _
            $region111: #{convlstm_cell_pallas.1} parent=108 // pred_check_branch
              %1267 = sbr.rel (0) target = $region113
            $region112: #{convlstm_cell_pallas.1} parent=108 // pred_region
              loop: start=0, step=1, limit=1
              $region114: #{convlstm_cell_pallas.1} parent=112 // loop_pre_header
                _
              $region115: #{convlstm_cell_pallas.1} parent=112 // loop_header
                %s1269 = sphi 0, %s1273
                %p1270 = scmp.ge.s32.totalorder %s1269, 1
                %s1274 = sphi %s1220, %s1220
                %s1275 = sphi %s1263, %s1263
              $region116: #{convlstm_cell_pallas.1} parent=112 // loop_header_branch
                %1272 = sbr.rel (%p1270) target = $region120
              $region117: #{convlstm_cell_pallas.1} parent=112 // loop_body
                %v1276 = vld [vmem:[%s1274] sm:$0xff]
                %1277 = vst [vmem:[%s1275] sm:$0xff] %v1276
                %v1278 = vld [vmem:[%s1274 + $0x8] sm:$0xff]
                %1279 = vst [vmem:[%s1275 + $0x8] sm:$0xff] %v1278
                %v1280 = vld [vmem:[%s1274 + $0x10] sm:$0xff]
                %1281 = vst [vmem:[%s1275 + $0x20] sm:$0xff] %v1280
                %v1282 = vld [vmem:[%s1274 + $0x18] sm:$0xff]
                %1283 = vst [vmem:[%s1275 + $0x28] sm:$0xff] %v1282
                %v1284 = vld [vmem:[%s1274 + $0x20] sm:$0xff]
                %1285 = vst [vmem:[%s1275 + $0x40] sm:$0xff] %v1284
                %v1286 = vld [vmem:[%s1274 + $0x28] sm:$0xff]
                %1287 = vst [vmem:[%s1275 + $0x48] sm:$0xff] %v1286
                %v1288 = vld [vmem:[%s1274 + $0x30] sm:$0xff]
                %1289 = vst [vmem:[%s1275 + $0x60] sm:$0xff] %v1288
                %v1290 = vld [vmem:[%s1274 + $0x38] sm:$0xff]
                %1291 = vst [vmem:[%s1275 + $0x68] sm:$0xff] %v1290
              $region118: #{convlstm_cell_pallas.1} parent=112 // loop_footer
                %s1273 = sadd.s32 1, %s1269
              $region119: #{convlstm_cell_pallas.1} parent=112 // loop_footer_branch
                %1268 = sbr.rel target = $region115
              $region120: #{convlstm_cell_pallas.1} parent=112 // loop_exit
                _
            $region113: #{convlstm_cell_pallas.1} parent=108 // pred_fallthru
              _
            // Predicated region
            $region121: #{convlstm_cell_pallas.1} parent=108 // pred_check
              _
            $region122: #{convlstm_cell_pallas.1} parent=108 // pred_check_branch
              %1293 = sbr.rel target = $region124
            $region123: #{convlstm_cell_pallas.1} parent=108 // pred_region
              _
            $region124: #{convlstm_cell_pallas.1} parent=108 // pred_fallthru
              _
          $region109: #{convlstm_cell_pallas.1} parent=104 // pred_fallthru
            _
          %1294 = vnop
        $region105: #{convlstm_cell_pallas.1} parent=69 // pred_fallthru
          _
      $region70: #{convlstm_cell_pallas.1} parent=5 // pred_fallthru
        _
      %p1295 = scmp.le.s32.totalorder 2, %s11
      // Predicated region
      $region125: #{convlstm_cell_pallas.1} parent=5 // pred_check
        %p1296 = pneg %p1295
      $region126: #{convlstm_cell_pallas.1} parent=5 // pred_check_branch
        %1298 = sbr.rel (%p1296) target = $region128
      $region127: #{convlstm_cell_pallas.1} parent=5 // pred_region
        %s1299 = ssub.s32 %s11, 2
        // Predicated region
        $region129: #{convlstm_cell_pallas.1} parent=127 // pred_check
          %p1300 = pneg %p113
        $region130: #{convlstm_cell_pallas.1} parent=127 // pred_check_branch
          %1302 = sbr.rel (%p1300) target = $region132
        $region131: #{convlstm_cell_pallas.1} parent=127 // pred_region
          %s1303 = sand.u32 %s98, 1
          %s1304 = sand.u32 %s98, 1
          %s1305 = smul.addr %s1304, 64
          %s1306 = scalar_lea.vmem [#allocation5], %s1305
        $region132: #{convlstm_cell_pallas.1} parent=127 // pred_fallthru
          _
        // Predicated region
        $region133: #{convlstm_cell_pallas.1} parent=127 // pred_check
          %p1307 = pneg %p139
        $region134: #{convlstm_cell_pallas.1} parent=127 // pred_check_branch
          %1309 = sbr.rel (%p1307) target = $region136
        $region135: #{convlstm_cell_pallas.1} parent=127 // pred_region
          %s1310 = sand.u32 %s124, 1
          %s1311 = sand.u32 %s124, 1
          %s1312 = smul.addr %s1311, 64
          %s1313 = scalar_lea.vmem [#allocation6], %s1312
        $region136: #{convlstm_cell_pallas.1} parent=127 // pred_fallthru
          _
      $region128: #{convlstm_cell_pallas.1} parent=5 // pred_fallthru
        _
    $region6: #{convlstm_cell_pallas.1} parent=1 // loop_footer
      %s15 = sadd.s32 1, %s11
    $region7: #{convlstm_cell_pallas.1} parent=1 // loop_footer_branch
      %10 = sbr.rel target = $region3
    $region8: #{convlstm_cell_pallas.1} parent=1 // loop_exit
      _

</llo_original>
